<compile_context>
chip_gen: v6e
topology: v6e:2x2x1
jax: 0.10.0
libtpu: 0.0.40
codegen_flags: <defaults>
</compile_context>

<pallas_src>
import functools
import jax
import jax.numpy as jnp
from jax.experimental import pallas as pl
from jax.experimental.pallas import tpu as pltpu


def _pa_kernel(x_ref, w_ref, b_ref, o_ref, sh_ref, *, K, H, W, C, BB):
    """BB images per grid step.
    x_ref : (BB, H, W*C)   channels-last input, (w, c) flattened on lane axis
    w_ref : (K*K, W*C)     per-tap depthwise weights, tiled over W
    b_ref : (1, W*C)       bias, tiled over W
    o_ref : (BB, H, W*C)   output = x * sigmoid(conv(x) + bias)
    sh_ref: (K, H, W*C)    f32 VMEM scratch: vertically pre-shifted planes
    """
    p = K // 2
    WC = W * C
    f32 = jnp.float32

    # Lane coordinate, used to zero-fill the horizontally shifted column sums.
    lane = jax.lax.broadcasted_iota(jnp.int32, (H, WC), 1)

    for bi in range(BB):
        # Aligned load of the image; it is both the ky==p plane and the gate
        # input (center-tap reuse: no misaligned re-slice of a padded plane).
        x_c = x_ref[bi].astype(f32)

        # ---- Pass 1: vertically pre-shifted, zero-filled planes ------------
        # sh_ref[ky][h, :] = x[h + ky - p, :]  (zero for rows outside [0, H)).
        # One sublane relayout per ky (K-1 total) instead of one per tap, and
        # the "same" padding is fused here instead of a wrapper jnp.pad pass.
        for ky in range(K):
            dy = ky - p
            if dy == 0:
                continue                      # center plane is x_c itself
            n = H - abs(dy)
            if dy > 0:
                sh_ref[ky, 0:n, :] = x_ref[bi, dy:dy + n, :].astype(f32)
                sh_ref[ky, n:H, :] = jnp.zeros((dy, WC), f32)
            else:
                z = -dy
                sh_ref[ky, 0:z, :] = jnp.zeros((z, WC), f32)
                sh_ref[ky, z:H, :] = x_ref[bi, 0:n, :].astype(f32)

        # ---- Pass 2: per-kx column sums, then ONE lane shift per kx ---------
        # Accumulator starts from the broadcast bias (no separate bias pass).
        acc = jnp.broadcast_to(b_ref[...].astype(f32), (H, WC))
        for kx in range(K):
            cs = x_c * w_ref[p * K + kx, :].astype(f32)          # ky == p term
            for ky in range(K):
                if ky == p:
                    continue
                cs = cs + sh_ref[ky] * w_ref[ky * K + kx, :].astype(f32)
            dx = kx - p
            if dx == 0:
                acc = acc + cs
            else:
                # contribution[h, j] = cs[h, j + dx*C] (zero past the border):
                # single XLU roll + VPU mask instead of a misaligned slice per tap.
                rolled = pltpu.roll(cs, (-dx * C) % WC, axis=1)
                if dx > 0:
                    keep = lane < (WC - dx * C)
                else:
                    keep = lane >= (-dx * C)
                acc = acc + jnp.where(keep, rolled, 0.0)

        o_ref[bi] = (x_c * jax.nn.sigmoid(acc)).astype(o_ref.dtype)


def _pick_bb(B):
    """Batch-block size: amortize per-grid-step overhead while keeping at
    least 2 grid steps so both v7x TensorCores get work."""
    for cand in (8, 4, 2):
        if B % cand == 0 and B // cand >= 2:
            return cand
    return 1


def pa_forward(x, weight, bias, kernel_size):
    """PA forward.  x: (B, C, H, W) NCHW; weight: (C, 1, K, K) (PyTorch
    depthwise layout); bias: (C,).  Returns x * sigmoid(dwconv(x) + bias)."""
    B, C, H, W = x.shape
    K = kernel_size
    WC = W * C

    # Channels-last with (w, c) flattened into one lane-dense minor axis.
    # (No jnp.pad here: the halo is produced inside the kernel.)
    x_cl = jnp.transpose(x, (0, 2, 3, 1)).reshape(B, H, WC)

    # Taps: (C,1,K,K) -> (K*K, C) -> tiled along the flattened (w, c) lane axis.
    w_taps = jnp.transpose(weight.reshape(C, K * K), (1, 0))     # (K*K, C)
    w_flat = jnp.tile(w_taps, (1, W))                            # (K*K, W*C)
    b_flat = jnp.tile(bias, W).reshape(1, WC)                    # (1, W*C)

    BB = _pick_bb(B)
    grid = (B // BB,)

    # Explicit VMEM budget (v7x: 64 MiB): double-buffered in/out blocks +
    # constant weight/bias blocks + the f32 pre-shifted scratch planes.
    itemsize = jnp.dtype(x.dtype).itemsize
    block_bytes = BB * H * WC * itemsize
    need = (2 * 2 * block_bytes
            + 2 * (K * K + 1) * WC * jnp.dtype(w_flat.dtype).itemsize
            + K * H * WC * 4)
    vmem_limit = int(min(64 << 20, max(16 << 20, 3 * need)))

    kern = functools.partial(_pa_kernel, K=K, H=H, W=W, C=C, BB=BB)
    out = pl.pallas_call(
        kern,
        out_shape=jax.ShapeDtypeStruct((B, H, WC), x.dtype),
        grid=grid,
        in_specs=[
            pl.BlockSpec((BB, H, WC), lambda b: (b, 0, 0)),
            pl.BlockSpec((K * K, WC), lambda b: (0, 0)),
            pl.BlockSpec((1, WC), lambda b: (0, 0)),
        ],
        out_specs=pl.BlockSpec((BB, H, WC), lambda b: (b, 0, 0)),
        scratch_shapes=[pltpu.VMEM((K, H, WC), jnp.float32)],
        compiler_params=pltpu.CompilerParams(
            dimension_semantics=("parallel",),
            vmem_limit_bytes=vmem_limit,
        ),
    )(x_cl, w_flat, b_flat)

    out = out.reshape(B, H, W, C)
    return jnp.transpose(out, (0, 3, 1, 2))                      # back to NCHW


def pa_reference(x, weight, bias, kernel_size):
    """Pure-JAX reference (matches PyTorch depthwise Conv2d + sigmoid gate)."""
    p = kernel_size // 2
    conv = jax.lax.conv_general_dilated(
        x, weight, window_strides=(1, 1), padding=((p, p), (p, p)),
        dimension_numbers=("NCHW", "OIHW", "NCHW"),
        feature_group_count=x.shape[1])
    conv = conv + bias[None, :, None, None]
    return x * jax.nn.sigmoid(conv)


if __name__ == "__main__":
    key = jax.random.PRNGKey(0)
    B, C, H, W = 2, 64, 16, 16
    for K in (5, 3):   # cover both kernel_size branches of PA
        k_x, k_w, k_b, key = jax.random.split(key, 4)
        x = jax.random.normal(k_x, (B, C, H, W), dtype=jnp.float32)
        weight = 0.1 * jax.random.normal(k_w, (C, 1, K, K), dtype=jnp.float32)
        bias = 0.1 * jax.random.normal(k_b, (C,), dtype=jnp.float32)

        out = pa_forward(x, weight, bias, K)
        jax.block_until_ready(out)
        assert out.shape == x.shape and out.dtype == x.dtype

        ref = pa_reference(x, weight, bias, K)
        assert jnp.allclose(out, ref, atol=1e-5, rtol=1e-5), f"mismatch for K={K}"

    print("KERNEL_OK")
</pallas_src>

<mosaic_0001>
module attributes {stable_mosaic.version = 11 : i64} {
  func.func @_pa_kernel(%arg0: i32, %arg1: memref<1x16x1024xf32, #tpu.memory_space<vmem>>, %arg2: memref<25x1024xf32, #tpu.memory_space<vmem>>, %arg3: memref<1x1024xf32, #tpu.memory_space<vmem>>, %arg4: memref<1x16x1024xf32, #tpu.memory_space<vmem>>, %arg5: memref<5x16x1024xf32, #tpu.memory_space<vmem>>) attributes {dimension_semantics = [#tpu.dimension_semantics<parallel>], iteration_bounds = array<i64: 2>, scalar_prefetch = 0 : i64, scratch_operands = 1 : i64, tpu.core_type = #tpu.core_type<tc>, window_params = [{transform_indices = @transform_0, window_bounds = array<i64: 1, 16, 1024>}, {pipeline_mode = #tpu.pipeline_mode<synchronous>, transform_indices = @transform_1, window_bounds = array<i64: 25, 1024>}, {pipeline_mode = #tpu.pipeline_mode<synchronous>, transform_indices = @transform_2, window_bounds = array<i64: 1, 1024>}, {transform_indices = @transform_3, window_bounds = array<i64: 1, 16, 1024>}]} {
    %0 = tpu.iota {dimensions = array<i32: 1>} : vector<16x1024xi32>
    %c0 = arith.constant 0 : index
    %c0_0 = arith.constant 0 : index
    %c0_1 = arith.constant 0 : index
    %1 = vector.load %arg1[%c0, %c0_0, %c0_1] : memref<1x16x1024xf32, #tpu.memory_space<vmem>>, vector<1x16x1024xf32>
    %2 = vector.shape_cast %1 : vector<1x16x1024xf32> to vector<16x1024xf32>
    %cst = arith.constant 0.000000e+00 : f32
    %3 = vector.broadcast %cst : f32 to vector<2x1024xf32>
    %c0_2 = arith.constant 0 : index
    %c0_3 = arith.constant 0 : index
    %c0_4 = arith.constant 0 : index
    %4 = vector.load %arg5[%c0_2, %c0_3, %c0_4] : memref<5x16x1024xf32, #tpu.memory_space<vmem>>, vector<1x2x1024xf32>
    %5 = vector.shape_cast %4 : vector<1x2x1024xf32> to vector<2x1024xf32>
    %6 = vector.shape_cast %3 : vector<2x1024xf32> to vector<1x2x1024xf32>
    tpu.vector_store %arg5[%c0_2, %c0_3, %c0_4], %6 {strides = array<i32>} : memref<5x16x1024xf32, #tpu.memory_space<vmem>>, vector<1x2x1024xf32>,
    %c0_5 = arith.constant 0 : index
    %c0_6 = arith.constant 0 : index
    %c0_7 = arith.constant 0 : index
    %7 = vector.load %arg1[%c0_5, %c0_6, %c0_7] : memref<1x16x1024xf32, #tpu.memory_space<vmem>>, vector<1x14x1024xf32>
    %8 = vector.shape_cast %7 : vector<1x14x1024xf32> to vector<14x1024xf32>
    %c0_8 = arith.constant 0 : index
    %c2 = arith.constant 2 : index
    %c0_9 = arith.constant 0 : index
    %9 = vector.load %arg5[%c0_8, %c2, %c0_9] : memref<5x16x1024xf32, #tpu.memory_space<vmem>>, vector<1x14x1024xf32>
    %10 = vector.shape_cast %9 : vector<1x14x1024xf32> to vector<14x1024xf32>
    %11 = vector.shape_cast %8 : vector<14x1024xf32> to vector<1x14x1024xf32>
    tpu.vector_store %arg5[%c0_8, %c2, %c0_9], %11 {strides = array<i32>} : memref<5x16x1024xf32, #tpu.memory_space<vmem>>, vector<1x14x1024xf32>,
    %cst_10 = arith.constant 0.000000e+00 : f32
    %12 = vector.broadcast %cst_10 : f32 to vector<1x1024xf32>
    %c1 = arith.constant 1 : index
    %c0_11 = arith.constant 0 : index
    %c0_12 = arith.constant 0 : index
    %13 = vector.load %arg5[%c1, %c0_11, %c0_12] : memref<5x16x1024xf32, #tpu.memory_space<vmem>>, vector<1x1x1024xf32>
    %14 = vector.shape_cast %13 : vector<1x1x1024xf32> to vector<1x1024xf32>
    %15 = vector.shape_cast %12 : vector<1x1024xf32> to vector<1x1x1024xf32>
    tpu.vector_store %arg5[%c1, %c0_11, %c0_12], %15 {strides = array<i32>} : memref<5x16x1024xf32, #tpu.memory_space<vmem>>, vector<1x1x1024xf32>,
    %c0_13 = arith.constant 0 : index
    %c0_14 = arith.constant 0 : index
    %c0_15 = arith.constant 0 : index
    %16 = vector.load %arg1[%c0_13, %c0_14, %c0_15] : memref<1x16x1024xf32, #tpu.memory_space<vmem>>, vector<1x15x1024xf32>
    %17 = vector.shape_cast %16 : vector<1x15x1024xf32> to vector<15x1024xf32>
    %c1_16 = arith.constant 1 : index
    %c1_17 = arith.constant 1 : index
    %c0_18 = arith.constant 0 : index
    %18 = vector.load %arg5[%c1_16, %c1_17, %c0_18] : memref<5x16x1024xf32, #tpu.memory_space<vmem>>, vector<1x15x1024xf32>
    %19 = vector.shape_cast %18 : vector<1x15x1024xf32> to vector<15x1024xf32>
    %20 = vector.shape_cast %17 : vector<15x1024xf32> to vector<1x15x1024xf32>
    tpu.vector_store %arg5[%c1_16, %c1_17, %c0_18], %20 {strides = array<i32>} : memref<5x16x1024xf32, #tpu.memory_space<vmem>>, vector<1x15x1024xf32>,
    %c0_19 = arith.constant 0 : index
    %c1_20 = arith.constant 1 : index
    %c0_21 = arith.constant 0 : index
    %21 = vector.load %arg1[%c0_19, %c1_20, %c0_21] : memref<1x16x1024xf32, #tpu.memory_space<vmem>>, vector<1x15x1024xf32>
    %22 = vector.shape_cast %21 : vector<1x15x1024xf32> to vector<15x1024xf32>
    %c3 = arith.constant 3 : index
    %c0_22 = arith.constant 0 : index
    %c0_23 = arith.constant 0 : index
    %23 = vector.load %arg5[%c3, %c0_22, %c0_23] : memref<5x16x1024xf32, #tpu.memory_space<vmem>>, vector<1x15x1024xf32>
    %24 = vector.shape_cast %23 : vector<1x15x1024xf32> to vector<15x1024xf32>
    %25 = vector.shape_cast %22 : vector<15x1024xf32> to vector<1x15x1024xf32>
    tpu.vector_store %arg5[%c3, %c0_22, %c0_23], %25 {strides = array<i32>} : memref<5x16x1024xf32, #tpu.memory_space<vmem>>, vector<1x15x1024xf32>,
    %cst_24 = arith.constant 0.000000e+00 : f32
    %26 = vector.broadcast %cst_24 : f32 to vector<1x1024xf32>
    %c3_25 = arith.constant 3 : index
    %c15 = arith.constant 15 : index
    %c0_26 = arith.constant 0 : index
    %27 = vector.load %arg5[%c3_25, %c15, %c0_26] : memref<5x16x1024xf32, #tpu.memory_space<vmem>>, vector<1x1x1024xf32>
    %28 = vector.shape_cast %27 : vector<1x1x1024xf32> to vector<1x1024xf32>
    %29 = vector.shape_cast %26 : vector<1x1024xf32> to vector<1x1x1024xf32>
    tpu.vector_store %arg5[%c3_25, %c15, %c0_26], %29 {strides = array<i32>} : memref<5x16x1024xf32, #tpu.memory_space<vmem>>, vector<1x1x1024xf32>,
    %c0_27 = arith.constant 0 : index
    %c2_28 = arith.constant 2 : index
    %c0_29 = arith.constant 0 : index
    %30 = vector.load %arg1[%c0_27, %c2_28, %c0_29] : memref<1x16x1024xf32, #tpu.memory_space<vmem>>, vector<1x14x1024xf32>
    %31 = vector.shape_cast %30 : vector<1x14x1024xf32> to vector<14x1024xf32>
    %c4 = arith.constant 4 : index
    %c0_30 = arith.constant 0 : index
    %c0_31 = arith.constant 0 : index
    %32 = vector.load %arg5[%c4, %c0_30, %c0_31] : memref<5x16x1024xf32, #tpu.memory_space<vmem>>, vector<1x14x1024xf32>
    %33 = vector.shape_cast %32 : vector<1x14x1024xf32> to vector<14x1024xf32>
    %34 = vector.shape_cast %31 : vector<14x1024xf32> to vector<1x14x1024xf32>
    tpu.vector_store %arg5[%c4, %c0_30, %c0_31], %34 {strides = array<i32>} : memref<5x16x1024xf32, #tpu.memory_space<vmem>>, vector<1x14x1024xf32>,
    %cst_32 = arith.constant 0.000000e+00 : f32
    %35 = vector.broadcast %cst_32 : f32 to vector<2x1024xf32>
    %c4_33 = arith.constant 4 : index
    %c14 = arith.constant 14 : index
    %c0_34 = arith.constant 0 : index
    %36 = vector.load %arg5[%c4_33, %c14, %c0_34] : memref<5x16x1024xf32, #tpu.memory_space<vmem>>, vector<1x2x1024xf32>
    %37 = vector.shape_cast %36 : vector<1x2x1024xf32> to vector<2x1024xf32>
    %38 = vector.shape_cast %35 : vector<2x1024xf32> to vector<1x2x1024xf32>
    tpu.vector_store %arg5[%c4_33, %c14, %c0_34], %38 {strides = array<i32>} : memref<5x16x1024xf32, #tpu.memory_space<vmem>>, vector<1x2x1024xf32>,
    %c0_35 = arith.constant 0 : index
    %c0_36 = arith.constant 0 : index
    %39 = vector.load %arg3[%c0_35, %c0_36] : memref<1x1024xf32, #tpu.memory_space<vmem>>, vector<1x1024xf32>
    %40 = vector.shape_cast %39 : vector<1x1024xf32> to vector<1x1024xf32>
    %41 = vector.broadcast %40 : vector<1x1024xf32> to vector<16x1024xf32>
    %c10 = arith.constant 10 : index
    %c0_37 = arith.constant 0 : index
    %42 = vector.load %arg2[%c10, %c0_37] : memref<25x1024xf32, #tpu.memory_space<vmem>>, vector<1x1024xf32>
    %43 = vector.shape_cast %42 : vector<1x1024xf32> to vector<1024xf32>
    %44 = vector.shape_cast %43 : vector<1024xf32> to vector<1x1024xf32>
    %45 = vector.broadcast %44 : vector<1x1024xf32> to vector<16x1024xf32>
    %46 = arith.mulf %2, %45 : vector<16x1024xf32>
    %c0_38 = arith.constant 0 : index
    %c0_39 = arith.constant 0 : index
    %c0_40 = arith.constant 0 : index
    %47 = vector.load %arg5[%c0_38, %c0_39, %c0_40] : memref<5x16x1024xf32, #tpu.memory_space<vmem>>, vector<1x16x1024xf32>
    %48 = vector.shape_cast %47 : vector<1x16x1024xf32> to vector<16x1024xf32>
    %c0_41 = arith.constant 0 : index
    %c0_42 = arith.constant 0 : index
    %49 = vector.load %arg2[%c0_41, %c0_42] : memref<25x1024xf32, #tpu.memory_space<vmem>>, vector<1x1024xf32>
    %50 = vector.shape_cast %49 : vector<1x1024xf32> to vector<1024xf32>
    %51 = vector.shape_cast %50 : vector<1024xf32> to vector<1x1024xf32>
    %52 = vector.broadcast %51 : vector<1x1024xf32> to vector<16x1024xf32>
    %53 = arith.mulf %48, %52 : vector<16x1024xf32>
    %54 = arith.addf %46, %53 : vector<16x1024xf32>
    %c1_43 = arith.constant 1 : index
    %c0_44 = arith.constant 0 : index
    %c0_45 = arith.constant 0 : index
    %55 = vector.load %arg5[%c1_43, %c0_44, %c0_45] : memref<5x16x1024xf32, #tpu.memory_space<vmem>>, vector<1x16x1024xf32>
    %56 = vector.shape_cast %55 : vector<1x16x1024xf32> to vector<16x1024xf32>
    %c5 = arith.constant 5 : index
    %c0_46 = arith.constant 0 : index
    %57 = vector.load %arg2[%c5, %c0_46] : memref<25x1024xf32, #tpu.memory_space<vmem>>, vector<1x1024xf32>
    %58 = vector.shape_cast %57 : vector<1x1024xf32> to vector<1024xf32>
    %59 = vector.shape_cast %58 : vector<1024xf32> to vector<1x1024xf32>
    %60 = vector.broadcast %59 : vector<1x1024xf32> to vector<16x1024xf32>
    %61 = arith.mulf %56, %60 : vector<16x1024xf32>
    %62 = arith.addf %54, %61 : vector<16x1024xf32>
    %c3_47 = arith.constant 3 : index
    %c0_48 = arith.constant 0 : index
    %c0_49 = arith.constant 0 : index
    %63 = vector.load %arg5[%c3_47, %c0_48, %c0_49] : memref<5x16x1024xf32, #tpu.memory_space<vmem>>, vector<1x16x1024xf32>
    %64 = vector.shape_cast %63 : vector<1x16x1024xf32> to vector<16x1024xf32>
    %c15_50 = arith.constant 15 : index
    %c0_51 = arith.constant 0 : index
    %65 = vector.load %arg2[%c15_50, %c0_51] : memref<25x1024xf32, #tpu.memory_space<vmem>>, vector<1x1024xf32>
    %66 = vector.shape_cast %65 : vector<1x1024xf32> to vector<1024xf32>
    %67 = vector.shape_cast %66 : vector<1024xf32> to vector<1x1024xf32>
    %68 = vector.broadcast %67 : vector<1x1024xf32> to vector<16x1024xf32>
    %69 = arith.mulf %64, %68 : vector<16x1024xf32>
    %70 = arith.addf %62, %69 : vector<16x1024xf32>
    %c4_52 = arith.constant 4 : index
    %c0_53 = arith.constant 0 : index
    %c0_54 = arith.constant 0 : index
    %71 = vector.load %arg5[%c4_52, %c0_53, %c0_54] : memref<5x16x1024xf32, #tpu.memory_space<vmem>>, vector<1x16x1024xf32>
    %72 = vector.shape_cast %71 : vector<1x16x1024xf32> to vector<16x1024xf32>
    %c20 = arith.constant 20 : index
    %c0_55 = arith.constant 0 : index
    %73 = vector.load %arg2[%c20, %c0_55] : memref<25x1024xf32, #tpu.memory_space<vmem>>, vector<1x1024xf32>
    %74 = vector.shape_cast %73 : vector<1x1024xf32> to vector<1024xf32>
    %75 = vector.shape_cast %74 : vector<1024xf32> to vector<1x1024xf32>
    %76 = vector.broadcast %75 : vector<1x1024xf32> to vector<16x1024xf32>
    %77 = arith.mulf %72, %76 : vector<16x1024xf32>
    %78 = arith.addf %70, %77 : vector<16x1024xf32>
    %c128_i32 = arith.constant 128 : i32
    %79 = tpu.dynamic_rotate %78 by %c128_i32 dim 1 : vector<16x1024xf32>, i32 -> vector<16x1024xf32>
    %c128_i32_56 = arith.constant 128 : i32
    %80 = vector.broadcast %c128_i32_56 : i32 to vector<16x1024xi32>
    %81 = arith.cmpi sge, %0, %80 : vector<16x1024xi32>
    %cst_57 = arith.constant 0.000000e+00 : f32
    %82 = vector.broadcast %cst_57 : f32 to vector<16x1024xf32>
    %83 = arith.select %81, %79, %82 : vector<16x1024xi1>, vector<16x1024xf32>
    %84 = arith.addf %41, %83 : vector<16x1024xf32>
    %c11 = arith.constant 11 : index
    %c0_58 = arith.constant 0 : index
    %85 = vector.load %arg2[%c11, %c0_58] : memref<25x1024xf32, #tpu.memory_space<vmem>>, vector<1x1024xf32>
    %86 = vector.shape_cast %85 : vector<1x1024xf32> to vector<1024xf32>
    %87 = vector.shape_cast %86 : vector<1024xf32> to vector<1x1024xf32>
    %88 = vector.broadcast %87 : vector<1x1024xf32> to vector<16x1024xf32>
    %89 = arith.mulf %2, %88 : vector<16x1024xf32>
    %c0_59 = arith.constant 0 : index
    %c0_60 = arith.constant 0 : index
    %c0_61 = arith.constant 0 : index
    %90 = vector.load %arg5[%c0_59, %c0_60, %c0_61] : memref<5x16x1024xf32, #tpu.memory_space<vmem>>, vector<1x16x1024xf32>
    %91 = vector.shape_cast %90 : vector<1x16x1024xf32> to vector<16x1024xf32>
    %c1_62 = arith.constant 1 : index
    %c0_63 = arith.constant 0 : index
    %92 = vector.load %arg2[%c1_62, %c0_63] : memref<25x1024xf32, #tpu.memory_space<vmem>>, vector<1x1024xf32>
    %93 = vector.shape_cast %92 : vector<1x1024xf32> to vector<1024xf32>
    %94 = vector.shape_cast %93 : vector<1024xf32> to vector<1x1024xf32>
    %95 = vector.broadcast %94 : vector<1x1024xf32> to vector<16x1024xf32>
    %96 = arith.mulf %91, %95 : vector<16x1024xf32>
    %97 = arith.addf %89, %96 : vector<16x1024xf32>
    %c1_64 = arith.constant 1 : index
    %c0_65 = arith.constant 0 : index
    %c0_66 = arith.constant 0 : index
    %98 = vector.load %arg5[%c1_64, %c0_65, %c0_66] : memref<5x16x1024xf32, #tpu.memory_space<vmem>>, vector<1x16x1024xf32>
    %99 = vector.shape_cast %98 : vector<1x16x1024xf32> to vector<16x1024xf32>
    %c6 = arith.constant 6 : index
    %c0_67 = arith.constant 0 : index
    %100 = vector.load %arg2[%c6, %c0_67] : memref<25x1024xf32, #tpu.memory_space<vmem>>, vector<1x1024xf32>
    %101 = vector.shape_cast %100 : vector<1x1024xf32> to vector<1024xf32>
    %102 = vector.shape_cast %101 : vector<1024xf32> to vector<1x1024xf32>
    %103 = vector.broadcast %102 : vector<1x1024xf32> to vector<16x1024xf32>
    %104 = arith.mulf %99, %103 : vector<16x1024xf32>
    %105 = arith.addf %97, %104 : vector<16x1024xf32>
    %c3_68 = arith.constant 3 : index
    %c0_69 = arith.constant 0 : index
    %c0_70 = arith.constant 0 : index
    %106 = vector.load %arg5[%c3_68, %c0_69, %c0_70] : memref<5x16x1024xf32, #tpu.memory_space<vmem>>, vector<1x16x1024xf32>
    %107 = vector.shape_cast %106 : vector<1x16x1024xf32> to vector<16x1024xf32>
    %c16 = arith.constant 16 : index
    %c0_71 = arith.constant 0 : index
    %108 = vector.load %arg2[%c16, %c0_71] : memref<25x1024xf32, #tpu.memory_space<vmem>>, vector<1x1024xf32>
    %109 = vector.shape_cast %108 : vector<1x1024xf32> to vector<1024xf32>
    %110 = vector.shape_cast %109 : vector<1024xf32> to vector<1x1024xf32>
    %111 = vector.broadcast %110 : vector<1x1024xf32> to vector<16x1024xf32>
    %112 = arith.mulf %107, %111 : vector<16x1024xf32>
    %113 = arith.addf %105, %112 : vector<16x1024xf32>
    %c4_72 = arith.constant 4 : index
    %c0_73 = arith.constant 0 : index
    %c0_74 = arith.constant 0 : index
    %114 = vector.load %arg5[%c4_72, %c0_73, %c0_74] : memref<5x16x1024xf32, #tpu.memory_space<vmem>>, vector<1x16x1024xf32>
    %115 = vector.shape_cast %114 : vector<1x16x1024xf32> to vector<16x1024xf32>
    %c21 = arith.constant 21 : index
    %c0_75 = arith.constant 0 : index
    %116 = vector.load %arg2[%c21, %c0_75] : memref<25x1024xf32, #tpu.memory_space<vmem>>, vector<1x1024xf32>
    %117 = vector.shape_cast %116 : vector<1x1024xf32> to vector<1024xf32>
    %118 = vector.shape_cast %117 : vector<1024xf32> to vector<1x1024xf32>
    %119 = vector.broadcast %118 : vector<1x1024xf32> to vector<16x1024xf32>
    %120 = arith.mulf %115, %119 : vector<16x1024xf32>
    %121 = arith.addf %113, %120 : vector<16x1024xf32>
    %c64_i32 = arith.constant 64 : i32
    %122 = tpu.dynamic_rotate %121 by %c64_i32 dim 1 : vector<16x1024xf32>, i32 -> vector<16x1024xf32>
    %c64_i32_76 = arith.constant 64 : i32
    %123 = vector.broadcast %c64_i32_76 : i32 to vector<16x1024xi32>
    %124 = arith.cmpi sge, %0, %123 : vector<16x1024xi32>
    %cst_77 = arith.constant 0.000000e+00 : f32
    %125 = vector.broadcast %cst_77 : f32 to vector<16x1024xf32>
    %126 = arith.select %124, %122, %125 : vector<16x1024xi1>, vector<16x1024xf32>
    %127 = arith.addf %84, %126 : vector<16x1024xf32>
    %c12 = arith.constant 12 : index
    %c0_78 = arith.constant 0 : index
    %128 = vector.load %arg2[%c12, %c0_78] : memref<25x1024xf32, #tpu.memory_space<vmem>>, vector<1x1024xf32>
    %129 = vector.shape_cast %128 : vector<1x1024xf32> to vector<1024xf32>
    %130 = vector.shape_cast %129 : vector<1024xf32> to vector<1x1024xf32>
    %131 = vector.broadcast %130 : vector<1x1024xf32> to vector<16x1024xf32>
    %132 = arith.mulf %2, %131 : vector<16x1024xf32>
    %c0_79 = arith.constant 0 : index
    %c0_80 = arith.constant 0 : index
    %c0_81 = arith.constant 0 : index
    %133 = vector.load %arg5[%c0_79, %c0_80, %c0_81] : memref<5x16x1024xf32, #tpu.memory_space<vmem>>, vector<1x16x1024xf32>
    %134 = vector.shape_cast %133 : vector<1x16x1024xf32> to vector<16x1024xf32>
    %c2_82 = arith.constant 2 : index
    %c0_83 = arith.constant 0 : index
    %135 = vector.load %arg2[%c2_82, %c0_83] : memref<25x1024xf32, #tpu.memory_space<vmem>>, vector<1x1024xf32>
    %136 = vector.shape_cast %135 : vector<1x1024xf32> to vector<1024xf32>
    %137 = vector.shape_cast %136 : vector<1024xf32> to vector<1x1024xf32>
    %138 = vector.broadcast %137 : vector<1x1024xf32> to vector<16x1024xf32>
    %139 = arith.mulf %134, %138 : vector<16x1024xf32>
    %140 = arith.addf %132, %139 : vector<16x1024xf32>
    %c1_84 = arith.constant 1 : index
    %c0_85 = arith.constant 0 : index
    %c0_86 = arith.constant 0 : index
    %141 = vector.load %arg5[%c1_84, %c0_85, %c0_86] : memref<5x16x1024xf32, #tpu.memory_space<vmem>>, vector<1x16x1024xf32>
    %142 = vector.shape_cast %141 : vector<1x16x1024xf32> to vector<16x1024xf32>
    %c7 = arith.constant 7 : index
    %c0_87 = arith.constant 0 : index
    %143 = vector.load %arg2[%c7, %c0_87] : memref<25x1024xf32, #tpu.memory_space<vmem>>, vector<1x1024xf32>
    %144 = vector.shape_cast %143 : vector<1x1024xf32> to vector<1024xf32>
    %145 = vector.shape_cast %144 : vector<1024xf32> to vector<1x1024xf32>
    %146 = vector.broadcast %145 : vector<1x1024xf32> to vector<16x1024xf32>
    %147 = arith.mulf %142, %146 : vector<16x1024xf32>
    %148 = arith.addf %140, %147 : vector<16x1024xf32>
    %c3_88 = arith.constant 3 : index
    %c0_89 = arith.constant 0 : index
    %c0_90 = arith.constant 0 : index
    %149 = vector.load %arg5[%c3_88, %c0_89, %c0_90] : memref<5x16x1024xf32, #tpu.memory_space<vmem>>, vector<1x16x1024xf32>
    %150 = vector.shape_cast %149 : vector<1x16x1024xf32> to vector<16x1024xf32>
    %c17 = arith.constant 17 : index
    %c0_91 = arith.constant 0 : index
    %151 = vector.load %arg2[%c17, %c0_91] : memref<25x1024xf32, #tpu.memory_space<vmem>>, vector<1x1024xf32>
    %152 = vector.shape_cast %151 : vector<1x1024xf32> to vector<1024xf32>
    %153 = vector.shape_cast %152 : vector<1024xf32> to vector<1x1024xf32>
    %154 = vector.broadcast %153 : vector<1x1024xf32> to vector<16x1024xf32>
    %155 = arith.mulf %150, %154 : vector<16x1024xf32>
    %156 = arith.addf %148, %155 : vector<16x1024xf32>
    %c4_92 = arith.constant 4 : index
    %c0_93 = arith.constant 0 : index
    %c0_94 = arith.constant 0 : index
    %157 = vector.load %arg5[%c4_92, %c0_93, %c0_94] : memref<5x16x1024xf32, #tpu.memory_space<vmem>>, vector<1x16x1024xf32>
    %158 = vector.shape_cast %157 : vector<1x16x1024xf32> to vector<16x1024xf32>
    %c22 = arith.constant 22 : index
    %c0_95 = arith.constant 0 : index
    %159 = vector.load %arg2[%c22, %c0_95] : memref<25x1024xf32, #tpu.memory_space<vmem>>, vector<1x1024xf32>
    %160 = vector.shape_cast %159 : vector<1x1024xf32> to vector<1024xf32>
    %161 = vector.shape_cast %160 : vector<1024xf32> to vector<1x1024xf32>
    %162 = vector.broadcast %161 : vector<1x1024xf32> to vector<16x1024xf32>
    %163 = arith.mulf %158, %162 : vector<16x1024xf32>
    %164 = arith.addf %156, %163 : vector<16x1024xf32>
    %165 = arith.addf %127, %164 : vector<16x1024xf32>
    %c13 = arith.constant 13 : index
    %c0_96 = arith.constant 0 : index
    %166 = vector.load %arg2[%c13, %c0_96] : memref<25x1024xf32, #tpu.memory_space<vmem>>, vector<1x1024xf32>
    %167 = vector.shape_cast %166 : vector<1x1024xf32> to vector<1024xf32>
    %168 = vector.shape_cast %167 : vector<1024xf32> to vector<1x1024xf32>
    %169 = vector.broadcast %168 : vector<1x1024xf32> to vector<16x1024xf32>
    %170 = arith.mulf %2, %169 : vector<16x1024xf32>
    %c0_97 = arith.constant 0 : index
    %c0_98 = arith.constant 0 : index
    %c0_99 = arith.constant 0 : index
    %171 = vector.load %arg5[%c0_97, %c0_98, %c0_99] : memref<5x16x1024xf32, #tpu.memory_space<vmem>>, vector<1x16x1024xf32>
    %172 = vector.shape_cast %171 : vector<1x16x1024xf32> to vector<16x1024xf32>
    %c3_100 = arith.constant 3 : index
    %c0_101 = arith.constant 0 : index
    %173 = vector.load %arg2[%c3_100, %c0_101] : memref<25x1024xf32, #tpu.memory_space<vmem>>, vector<1x1024xf32>
    %174 = vector.shape_cast %173 : vector<1x1024xf32> to vector<1024xf32>
    %175 = vector.shape_cast %174 : vector<1024xf32> to vector<1x1024xf32>
    %176 = vector.broadcast %175 : vector<1x1024xf32> to vector<16x1024xf32>
    %177 = arith.mulf %172, %176 : vector<16x1024xf32>
    %178 = arith.addf %170, %177 : vector<16x1024xf32>
    %c1_102 = arith.constant 1 : index
    %c0_103 = arith.constant 0 : index
    %c0_104 = arith.constant 0 : index
    %179 = vector.load %arg5[%c1_102, %c0_103, %c0_104] : memref<5x16x1024xf32, #tpu.memory_space<vmem>>, vector<1x16x1024xf32>
    %180 = vector.shape_cast %179 : vector<1x16x1024xf32> to vector<16x1024xf32>
    %c8 = arith.constant 8 : index
    %c0_105 = arith.constant 0 : index
    %181 = vector.load %arg2[%c8, %c0_105] : memref<25x1024xf32, #tpu.memory_space<vmem>>, vector<1x1024xf32>
    %182 = vector.shape_cast %181 : vector<1x1024xf32> to vector<1024xf32>
    %183 = vector.shape_cast %182 : vector<1024xf32> to vector<1x1024xf32>
    %184 = vector.broadcast %183 : vector<1x1024xf32> to vector<16x1024xf32>
    %185 = arith.mulf %180, %184 : vector<16x1024xf32>
    %186 = arith.addf %178, %185 : vector<16x1024xf32>
    %c3_106 = arith.constant 3 : index
    %c0_107 = arith.constant 0 : index
    %c0_108 = arith.constant 0 : index
    %187 = vector.load %arg5[%c3_106, %c0_107, %c0_108] : memref<5x16x1024xf32, #tpu.memory_space<vmem>>, vector<1x16x1024xf32>
    %188 = vector.shape_cast %187 : vector<1x16x1024xf32> to vector<16x1024xf32>
    %c18 = arith.constant 18 : index
    %c0_109 = arith.constant 0 : index
    %189 = vector.load %arg2[%c18, %c0_109] : memref<25x1024xf32, #tpu.memory_space<vmem>>, vector<1x1024xf32>
    %190 = vector.shape_cast %189 : vector<1x1024xf32> to vector<1024xf32>
    %191 = vector.shape_cast %190 : vector<1024xf32> to vector<1x1024xf32>
    %192 = vector.broadcast %191 : vector<1x1024xf32> to vector<16x1024xf32>
    %193 = arith.mulf %188, %192 : vector<16x1024xf32>
    %194 = arith.addf %186, %193 : vector<16x1024xf32>
    %c4_110 = arith.constant 4 : index
    %c0_111 = arith.constant 0 : index
    %c0_112 = arith.constant 0 : index
    %195 = vector.load %arg5[%c4_110, %c0_111, %c0_112] : memref<5x16x1024xf32, #tpu.memory_space<vmem>>, vector<1x16x1024xf32>
    %196 = vector.shape_cast %195 : vector<1x16x1024xf32> to vector<16x1024xf32>
    %c23 = arith.constant 23 : index
    %c0_113 = arith.constant 0 : index
    %197 = vector.load %arg2[%c23, %c0_113] : memref<25x1024xf32, #tpu.memory_space<vmem>>, vector<1x1024xf32>
    %198 = vector.shape_cast %197 : vector<1x1024xf32> to vector<1024xf32>
    %199 = vector.shape_cast %198 : vector<1024xf32> to vector<1x1024xf32>
    %200 = vector.broadcast %199 : vector<1x1024xf32> to vector<16x1024xf32>
    %201 = arith.mulf %196, %200 : vector<16x1024xf32>
    %202 = arith.addf %194, %201 : vector<16x1024xf32>
    %c960_i32 = arith.constant 960 : i32
    %203 = tpu.dynamic_rotate %202 by %c960_i32 dim 1 : vector<16x1024xf32>, i32 -> vector<16x1024xf32>
    %c960_i32_114 = arith.constant 960 : i32
    %204 = vector.broadcast %c960_i32_114 : i32 to vector<16x1024xi32>
    %205 = arith.cmpi slt, %0, %204 : vector<16x1024xi32>
    %cst_115 = arith.constant 0.000000e+00 : f32
    %206 = vector.broadcast %cst_115 : f32 to vector<16x1024xf32>
    %207 = arith.select %205, %203, %206 : vector<16x1024xi1>, vector<16x1024xf32>
    %208 = arith.addf %165, %207 : vector<16x1024xf32>
    %c14_116 = arith.constant 14 : index
    %c0_117 = arith.constant 0 : index
    %209 = vector.load %arg2[%c14_116, %c0_117] : memref<25x1024xf32, #tpu.memory_space<vmem>>, vector<1x1024xf32>
    %210 = vector.shape_cast %209 : vector<1x1024xf32> to vector<1024xf32>
    %211 = vector.shape_cast %210 : vector<1024xf32> to vector<1x1024xf32>
    %212 = vector.broadcast %211 : vector<1x1024xf32> to vector<16x1024xf32>
    %213 = arith.mulf %2, %212 : vector<16x1024xf32>
    %c0_118 = arith.constant 0 : index
    %c0_119 = arith.constant 0 : index
    %c0_120 = arith.constant 0 : index
    %214 = vector.load %arg5[%c0_118, %c0_119, %c0_120] : memref<5x16x1024xf32, #tpu.memory_space<vmem>>, vector<1x16x1024xf32>
    %215 = vector.shape_cast %214 : vector<1x16x1024xf32> to vector<16x1024xf32>
    %c4_121 = arith.constant 4 : index
    %c0_122 = arith.constant 0 : index
    %216 = vector.load %arg2[%c4_121, %c0_122] : memref<25x1024xf32, #tpu.memory_space<vmem>>, vector<1x1024xf32>
    %217 = vector.shape_cast %216 : vector<1x1024xf32> to vector<1024xf32>
    %218 = vector.shape_cast %217 : vector<1024xf32> to vector<1x1024xf32>
    %219 = vector.broadcast %218 : vector<1x1024xf32> to vector<16x1024xf32>
    %220 = arith.mulf %215, %219 : vector<16x1024xf32>
    %221 = arith.addf %213, %220 : vector<16x1024xf32>
    %c1_123 = arith.constant 1 : index
    %c0_124 = arith.constant 0 : index
    %c0_125 = arith.constant 0 : index
    %222 = vector.load %arg5[%c1_123, %c0_124, %c0_125] : memref<5x16x1024xf32, #tpu.memory_space<vmem>>, vector<1x16x1024xf32>
    %223 = vector.shape_cast %222 : vector<1x16x1024xf32> to vector<16x1024xf32>
    %c9 = arith.constant 9 : index
    %c0_126 = arith.constant 0 : index
    %224 = vector.load %arg2[%c9, %c0_126] : memref<25x1024xf32, #tpu.memory_space<vmem>>, vector<1x1024xf32>
    %225 = vector.shape_cast %224 : vector<1x1024xf32> to vector<1024xf32>
    %226 = vector.shape_cast %225 : vector<1024xf32> to vector<1x1024xf32>
    %227 = vector.broadcast %226 : vector<1x1024xf32> to vector<16x1024xf32>
    %228 = arith.mulf %223, %227 : vector<16x1024xf32>
    %229 = arith.addf %221, %228 : vector<16x1024xf32>
    %c3_127 = arith.constant 3 : index
    %c0_128 = arith.constant 0 : index
    %c0_129 = arith.constant 0 : index
    %230 = vector.load %arg5[%c3_127, %c0_128, %c0_129] : memref<5x16x1024xf32, #tpu.memory_space<vmem>>, vector<1x16x1024xf32>
    %231 = vector.shape_cast %230 : vector<1x16x1024xf32> to vector<16x1024xf32>
    %c19 = arith.constant 19 : index
    %c0_130 = arith.constant 0 : index
    %232 = vector.load %arg2[%c19, %c0_130] : memref<25x1024xf32, #tpu.memory_space<vmem>>, vector<1x1024xf32>
    %233 = vector.shape_cast %232 : vector<1x1024xf32> to vector<1024xf32>
    %234 = vector.shape_cast %233 : vector<1024xf32> to vector<1x1024xf32>
    %235 = vector.broadcast %234 : vector<1x1024xf32> to vector<16x1024xf32>
    %236 = arith.mulf %231, %235 : vector<16x1024xf32>
    %237 = arith.addf %229, %236 : vector<16x1024xf32>
    %c4_131 = arith.constant 4 : index
    %c0_132 = arith.constant 0 : index
    %c0_133 = arith.constant 0 : index
    %238 = vector.load %arg5[%c4_131, %c0_132, %c0_133] : memref<5x16x1024xf32, #tpu.memory_space<vmem>>, vector<1x16x1024xf32>
    %239 = vector.shape_cast %238 : vector<1x16x1024xf32> to vector<16x1024xf32>
    %c24 = arith.constant 24 : index
    %c0_134 = arith.constant 0 : index
    %240 = vector.load %arg2[%c24, %c0_134] : memref<25x1024xf32, #tpu.memory_space<vmem>>, vector<1x1024xf32>
    %241 = vector.shape_cast %240 : vector<1x1024xf32> to vector<1024xf32>
    %242 = vector.shape_cast %241 : vector<1024xf32> to vector<1x1024xf32>
    %243 = vector.broadcast %242 : vector<1x1024xf32> to vector<16x1024xf32>
    %244 = arith.mulf %239, %243 : vector<16x1024xf32>
    %245 = arith.addf %237, %244 : vector<16x1024xf32>
    %c896_i32 = arith.constant 896 : i32
    %246 = tpu.dynamic_rotate %245 by %c896_i32 dim 1 : vector<16x1024xf32>, i32 -> vector<16x1024xf32>
    %c896_i32_135 = arith.constant 896 : i32
    %247 = vector.broadcast %c896_i32_135 : i32 to vector<16x1024xi32>
    %248 = arith.cmpi slt, %0, %247 : vector<16x1024xi32>
    %cst_136 = arith.constant 0.000000e+00 : f32
    %249 = vector.broadcast %cst_136 : f32 to vector<16x1024xf32>
    %250 = arith.select %248, %246, %249 : vector<16x1024xi1>, vector<16x1024xf32>
    %251 = arith.addf %208, %250 : vector<16x1024xf32>
    %252 = arith.negf %251 : vector<16x1024xf32>
    %253 = math.exp %252 : vector<16x1024xf32>
    %cst_137 = arith.constant 1.000000e+00 : f32
    %254 = vector.broadcast %cst_137 : f32 to vector<16x1024xf32>
    %255 = arith.addf %254, %253 : vector<16x1024xf32>
    %256 = arith.divf %254, %255 : vector<16x1024xf32>
    %257 = arith.mulf %2, %256 : vector<16x1024xf32>
    %c0_138 = arith.constant 0 : index
    %c0_139 = arith.constant 0 : index
    %c0_140 = arith.constant 0 : index
    %258 = vector.load %arg4[%c0_138, %c0_139, %c0_140] : memref<1x16x1024xf32, #tpu.memory_space<vmem>>, vector<1x16x1024xf32>
    %259 = vector.shape_cast %258 : vector<1x16x1024xf32> to vector<16x1024xf32>
    %260 = vector.shape_cast %257 : vector<16x1024xf32> to vector<1x16x1024xf32>
    tpu.vector_store %arg4[%c0_138, %c0_139, %c0_140], %260 {strides = array<i32>} : memref<1x16x1024xf32, #tpu.memory_space<vmem>>, vector<1x16x1024xf32>,
    return
  }
  func.func @transform_0(%arg0: i32) -> (i32, i32, i32) {
    %c0_i32 = arith.constant 0 : i32
    %c0_i32_0 = arith.constant 0 : i32
    %c0_i32_1 = arith.constant 0 : i32
    return %arg0, %c0_i32, %c0_i32_0 : i32, i32, i32
  }
  func.func @transform_1(%arg0: i32) -> (i32, i32) {
    %c0_i32 = arith.constant 0 : i32
    %c0_i32_0 = arith.constant 0 : i32
    %c0_i32_1 = arith.constant 0 : i32
    return %c0_i32, %c0_i32_0 : i32, i32
  }
  func.func @transform_2(%arg0: i32) -> (i32, i32) {
    %c0_i32 = arith.constant 0 : i32
    %c0_i32_0 = arith.constant 0 : i32
    %c0_i32_1 = arith.constant 0 : i32
    return %c0_i32, %c0_i32_0 : i32, i32
  }
  func.func @transform_3(%arg0: i32) -> (i32, i32, i32) {
    %c0_i32 = arith.constant 0 : i32
    %c0_i32_0 = arith.constant 0 : i32
    %c0_i32_1 = arith.constant 0 : i32
    return %arg0, %c0_i32, %c0_i32_0 : i32, i32, i32
  }
}

</mosaic_0001>

<llo_original>
// kernel: tpu_custom_call.1
$region0: #{tpu_custom_call.1}
  #allocation0 [shape = 'u32[]', space=smem, size = 0x4, offset = 0x4, fixed_abs, tag = 'smem constant byte address 0x4 - core index']
  #allocation1 [shape = 'u32[144,128]{1,0:T(1,128)}', space=vmem, size = 0x12000, scoped, tag = 'internal scratch']
  #allocation2 [shape = 'f32[5,16,1024]{2,1,0:T(8,128)}', space=vmem, size = 0x50000, scoped, tag = 'scratch operand']
  %s0 = inlined_call_operand.hbm [shape: f32[2,16,1024], index: 0, kind: input, shape index: {}]
  %s1 = inlined_call_operand.hbm [shape: f32[25,1024], index: 1, kind: input, shape index: {}]
  %s2 = inlined_call_operand.hbm [shape: f32[1,1024], index: 2, kind: input, shape index: {}]
  %s3 = inlined_call_operand.hbm [shape: f32[2,16,1024], index: 3, kind: output, shape index: {}]
  %s4 = sld [smem:[#allocation0]]
  $region57: #{tpu_custom_call.1} parent=0
    _
  %s6 = ssub.s32 1, %s4
  %s7 = scalar_select 0, %s6, %s4
  $region1: #{tpu_custom_call.1} parent=0
    #allocation3 [shape = 'u8[131072]{0}', space=vmem, size = 0x20000, scoped, tag = 'input window, operand 0']
    #allocation4 [shape = 's32[2]{0}', space=sflag, size = 0x8, scoped, tag = 'scoped memory for tpu_custom_call.1']
    #allocation5 [shape = 's32[2]{0}', space=sflag, size = 0x8, scoped, tag = 'scoped memory for tpu_custom_call.1']
    #allocation6 [shape = 'u8[131072]{0}', space=vmem, size = 0x20000, scoped, tag = 'input window, operand 1, single buffered']
    #allocation7 [shape = 's32[1]{0}', space=sflag, size = 0x4, scoped, tag = 'scoped memory for tpu_custom_call.1']
    #allocation8 [shape = 'u8[4096]{0}', space=vmem, size = 0x1000, scoped, tag = 'input window, operand 2, single buffered']
    #allocation9 [shape = 'u8[131072]{0}', space=vmem, size = 0x20000, scoped, tag = 'output window, operand 0']
    %8 = vsyncpa [#allocation4], 0
    %s9 = scalar_lea.sflag [#allocation4], 1
    %10 = vsyncpa %s9, 0
    %11 = vsyncpa [#allocation7], 0
    %12 = vsyncpa [#allocation5], 0
    %s13 = scalar_lea.sflag [#allocation5], 1
    %14 = vsyncpa %s13, 0
    loop: start=0, step=1, limit=4
    $region2: #{tpu_custom_call.1} parent=1 // loop_pre_header
      _
    $region3: #{tpu_custom_call.1} parent=1 // loop_header
      %s16 = sphi 0, %s20
      %p17 = scmp.ge.s32.totalorder %s16, 4
      %s26 = sphi 0, %s28
      %s29 = sphi 0, %s26
      %s30 = sphi 0, %s29
      %s46 = sphi 0, %s30
      %s50 = sphi 0, %s50
      %s52 = sphi 0, %s50
      %s53 = sphi 0, %s52
      %s67 = sphi 0, %s53
      %s71 = sphi 0, %s71
      %s73 = sphi 0, %s71
      %s74 = sphi 0, %s73
      %s88 = sphi 0, %s74
      %s94 = sphi 0, %s96
      %s97 = sphi 0, %s94
      %s98 = sphi 0, %s97
      %s114 = sphi 0, %s98
    $region4: #{tpu_custom_call.1} parent=1 // loop_header_branch
      %19 = sbr.rel (%p17) target = $region8
    $region5: #{tpu_custom_call.1} parent=1 // loop_body
      %s21 = ssub.s32 %s16, 1
      %s22 = ssub.s32 %s16, 2
      %s23 = sadd.s32 %s16, 1
      %s24 = ssub.s32 %s16, %s23
      %p25 = scmp.eq.s32.totalorder %s24, 0
      %s27 = sadd.s32 %s26, 1
      %s28 = scalar_select %p25, %s26, %s27
      %p31 = pneg %p25
      %p32 = scmp.eq.s32.totalorder %s16, 1
      %p33 = por %p31, %p32
      %p34 = scmp.ne.s32.totalorder %s26, %s29
      %p35 = scmp.eq.s32.totalorder %s16, 0
      %p36 = por %p34, %p35
      %p37 = scmp.ne.s32.totalorder %s26, %s29
      %p38 = scmp.eq.s32.totalorder %s21, 1
      %p39 = por %p37, %p38
      %p40 = scmp.ne.s32.totalorder %s29, %s30
      %p41 = scmp.eq.s32.totalorder %s21, 0
      %p42 = por %p40, %p41
      %p43 = scmp.ne.s32.totalorder %s29, %s30
      %p44 = scmp.eq.s32.totalorder %s22, 1
      %p45 = por %p43, %p44
      %p47 = scmp.ne.s32.totalorder %s30, %s46
      %p48 = scmp.eq.s32.totalorder %s22, 0
      %p49 = por %p47, %p48
      %s51 = sadd.s32 %s50, 1
      %p54 = scmp.eq.s32.totalorder %s16, 1
      %p55 = scmp.ne.s32.totalorder %s50, %s52
      %p56 = scmp.eq.s32.totalorder %s16, 0
      %p57 = por %p55, %p56
      %p58 = scmp.ne.s32.totalorder %s50, %s52
      %p59 = scmp.eq.s32.totalorder %s21, 1
      %p60 = por %p58, %p59
      %p61 = scmp.ne.s32.totalorder %s52, %s53
      %p62 = scmp.eq.s32.totalorder %s21, 0
      %p63 = por %p61, %p62
      %p64 = scmp.ne.s32.totalorder %s52, %s53
      %p65 = scmp.eq.s32.totalorder %s22, 1
      %p66 = por %p64, %p65
      %p68 = scmp.ne.s32.totalorder %s53, %s67
      %p69 = scmp.eq.s32.totalorder %s22, 0
      %p70 = por %p68, %p69
      %s72 = sadd.s32 %s71, 1
      %p75 = scmp.eq.s32.totalorder %s16, 1
      %p76 = scmp.ne.s32.totalorder %s71, %s73
      %p77 = scmp.eq.s32.totalorder %s16, 0
      %p78 = por %p76, %p77
      %p79 = scmp.ne.s32.totalorder %s71, %s73
      %p80 = scmp.eq.s32.totalorder %s21, 1
      %p81 = por %p79, %p80
      %p82 = scmp.ne.s32.totalorder %s73, %s74
      %p83 = scmp.eq.s32.totalorder %s21, 0
      %p84 = por %p82, %p83
      %p85 = scmp.ne.s32.totalorder %s73, %s74
      %p86 = scmp.eq.s32.totalorder %s22, 1
      %p87 = por %p85, %p86
      %p89 = scmp.ne.s32.totalorder %s74, %s88
      %p90 = scmp.eq.s32.totalorder %s22, 0
      %p91 = por %p89, %p90
      %s92 = ssub.s32 %s16, %s23
      %p93 = scmp.eq.s32.totalorder %s92, 0
      %s95 = sadd.s32 %s94, 1
      %s96 = scalar_select %p93, %s94, %s95
      %p99 = pneg %p93
      %p100 = scmp.eq.s32.totalorder %s16, 1
      %p101 = por %p99, %p100
      %p102 = scmp.ne.s32.totalorder %s94, %s97
      %p103 = scmp.eq.s32.totalorder %s16, 0
      %p104 = por %p102, %p103
      %p105 = scmp.ne.s32.totalorder %s94, %s97
      %p106 = scmp.eq.s32.totalorder %s21, 1
      %p107 = por %p105, %p106
      %p108 = scmp.ne.s32.totalorder %s97, %s98
      %p109 = scmp.eq.s32.totalorder %s21, 0
      %p110 = por %p108, %p109
      %p111 = scmp.ne.s32.totalorder %s97, %s98
      %p112 = scmp.eq.s32.totalorder %s22, 1
      %p113 = por %p111, %p112
      %p115 = scmp.ne.s32.totalorder %s98, %s114
      %p116 = scmp.eq.s32.totalorder %s22, 0
      %p117 = por %p115, %p116
      %p118 = scmp.le.s32.totalorder 1, %s16
      %p119 = scmp.lt.s32.totalorder %s16, 3
      %p120 = pnand %p118, %p119
      %p121 = pneg %p120
      // Predicated region
      $region9: #{tpu_custom_call.1} parent=5 // pred_check
        _
      $region10: #{tpu_custom_call.1} parent=5 // pred_check_branch
        %123 = sbr.rel (%p120) target = $region12
      $region11: #{tpu_custom_call.1} parent=5 // pred_region
        %s124 = ssub.s32 %s16, 1
        // Predicated region
        $region13: #{tpu_custom_call.1} parent=11 // pred_check
          %p125 = pneg %p63
        $region14: #{tpu_custom_call.1} parent=11 // pred_check_branch
          %127 = sbr.rel (%p125) target = $region16
        $region15: #{tpu_custom_call.1} parent=11 // pred_region
          %s129 = ssub.s32 4096, 4096
          %130 = vsyncadd [#allocation7], %s129
          %s131 = sshll.u32 [#allocation6], 4
          %s132 = int_to_ptr.vmem [resolvable:$true] %s131
          %137 = dma.hbm_to_vmem [thread:$0]  %s1, 4096, %s132, [#allocation7], 1024, 1024, 64
        $region16: #{tpu_custom_call.1} parent=11 // pred_fallthru
          _
        // Predicated region
        $region17: #{tpu_custom_call.1} parent=11 // pred_check
          %p138 = pneg %p84
        $region18: #{tpu_custom_call.1} parent=11 // pred_check_branch
          %140 = sbr.rel (%p138) target = $region20
        $region19: #{tpu_custom_call.1} parent=11 // pred_region
          %s142 = ssub.s32 128, 128
          %143 = vsyncadd [#allocation7], %s142
          %s145 = sshll.u32 [#allocation8], 4
          %s146 = int_to_ptr.vmem [resolvable:$true] %s145
          %148 = dma.hbm_to_vmem [thread:$0]  %s2, 128, %s146, [#allocation7]
        $region20: #{tpu_custom_call.1} parent=11 // pred_fallthru
          _
      $region12: #{tpu_custom_call.1} parent=5 // pred_fallthru
        _
      %p149 = scmp.lt.s32.totalorder %s16, 2
      // Predicated region
      $region21: #{tpu_custom_call.1} parent=5 // pred_check
        %p150 = pneg %p149
      $region22: #{tpu_custom_call.1} parent=5 // pred_check_branch
        %152 = sbr.rel (%p150) target = $region24
      $region23: #{tpu_custom_call.1} parent=5 // pred_region
        // Predicated region
        $region25: #{tpu_custom_call.1} parent=23 // pred_check
          %p153 = pneg %p36
        $region26: #{tpu_custom_call.1} parent=23 // pred_check_branch
          %155 = sbr.rel (%p153) target = $region28
        $region27: #{tpu_custom_call.1} parent=23 // pred_region
          %s156 = sand.u32 %s26, 1
          %s157 = scalar_lea.sflag [#allocation4], %s156
          %s158 = sand.u32 %s26, 1
          %s159 = smul.addr %s158, 128
          %s160 = scalar_lea.vmem [#allocation3], %s159
          %s162 = ssub.s32 2048, 2048
          %163 = vsyncadd %s157, %s162
          %s164 = smul.addr %s16, 16
          %s165 = smul.addr %s164, 128
          %s166 = scalar_lea.hbm %s0, %s165
          %s167 = sshll.u32 %s160, 4
          %s168 = int_to_ptr.vmem [resolvable:$true] %s167
          %173 = dma.hbm_to_vmem [thread:$0]  %s166, 2048, %s168, %s157, 1024, 1024, 64
        $region28: #{tpu_custom_call.1} parent=23 // pred_fallthru
          _
      $region24: #{tpu_custom_call.1} parent=5 // pred_fallthru
        _
      %p174 = scmp.le.s32.totalorder 1, %s16
      %p175 = scmp.lt.s32.totalorder %s16, 3
      %p176 = pnand %p174, %p175
      %p177 = pneg %p176
      // Predicated region
      $region29: #{tpu_custom_call.1} parent=5 // pred_check
        _
      $region30: #{tpu_custom_call.1} parent=5 // pred_check_branch
        %179 = sbr.rel (%p176) target = $region32
      $region31: #{tpu_custom_call.1} parent=5 // pred_region
        %s180 = ssub.s32 %s16, 1
        %s181 = sand.u32 %s29, 1
        %s182 = scalar_lea.sflag [#allocation4], %s181
        %s183 = sand.u32 %s29, 1
        %s184 = smul.addr %s183, 128
        %s185 = scalar_lea.vmem [#allocation3], %s184
        // Predicated region
        $region33: #{tpu_custom_call.1} parent=31 // pred_check
          %p186 = pneg %p42
        $region34: #{tpu_custom_call.1} parent=31 // pred_check_branch
          %188 = sbr.rel (%p186) target = $region36
        $region35: #{tpu_custom_call.1} parent=31 // pred_region
          %189 = dma.done %s182, 2048
        $region36: #{tpu_custom_call.1} parent=31 // pred_fallthru
          _
        // Predicated region
        $region37: #{tpu_custom_call.1} parent=31 // pred_check
          %p190 = pneg %p63
        $region38: #{tpu_custom_call.1} parent=31 // pred_check_branch
          %192 = sbr.rel (%p190) target = $region40
        $region39: #{tpu_custom_call.1} parent=31 // pred_region
          %193 = dma.done [#allocation7], 4096
        $region40: #{tpu_custom_call.1} parent=31 // pred_fallthru
          _
        // Predicated region
        $region41: #{tpu_custom_call.1} parent=31 // pred_check
          %p194 = pneg %p84
        $region42: #{tpu_custom_call.1} parent=31 // pred_check_branch
          %196 = sbr.rel (%p194) target = $region44
        $region43: #{tpu_custom_call.1} parent=31 // pred_region
          %197 = dma.done [#allocation7], 128
        $region44: #{tpu_custom_call.1} parent=31 // pred_fallthru
          _
        %s198 = sand.u32 %s29, 1
        %s199 = scalar_lea.sflag [#allocation4], %s198
        %s200 = sand.u32 %s29, 1
        %s201 = smul.addr %s200, 128
        %s202 = scalar_lea.vmem [#allocation3], %s201
        %p203 = pneg %p42
        %p204 = pneg %p39
        %p205 = pneg %p63
        %p206 = pneg %p60
        %p207 = pneg %p84
        %p208 = pneg %p81
        %p209 = pneg %p110
        %p210 = pneg %p107
        %s211 = sand.u32 %s97, 1
        %s212 = scalar_lea.sflag [#allocation5], %s211
        %s213 = sand.u32 %s97, 1
        %s214 = smul.addr %s213, 128
        %s215 = scalar_lea.vmem [#allocation9], %s214
        %v216 = vlaneseq
        %v217 = vand.u32 %v216, 127
        %v218 = vadd.s32 %v217, 128
        %v219 = vadd.s32 %v217, 256
        %v220 = vadd.s32 %v217, 384
        %v221 = vadd.s32 %v217, 512
        %v222 = vadd.s32 %v217, 640
        %v223 = vadd.s32 %v217, 768
        %v224 = vadd.s32 %v217, 896
        %v225 = vld [vmem:[%s185] sm:$0xff]
        %v226 = vld [vmem:[%s185 + $0x8] sm:$0xff]
        %v227 = vld [vmem:[%s185 + $0x10] sm:$0xff]
        %v228 = vld [vmem:[%s185 + $0x18] sm:$0xff]
        %v229 = vld [vmem:[%s185 + $0x20] sm:$0xff]
        %v230 = vld [vmem:[%s185 + $0x28] sm:$0xff]
        %v231 = vld [vmem:[%s185 + $0x30] sm:$0xff]
        %v232 = vld [vmem:[%s185 + $0x38] sm:$0xff]
        %v233 = vld [vmem:[%s185 + $0x40] sm:$0xff]
        %v234 = vld [vmem:[%s185 + $0x48] sm:$0xff]
        %v235 = vld [vmem:[%s185 + $0x50] sm:$0xff]
        %v236 = vld [vmem:[%s185 + $0x58] sm:$0xff]
        %v237 = vld [vmem:[%s185 + $0x60] sm:$0xff]
        %v238 = vld [vmem:[%s185 + $0x68] sm:$0xff]
        %v239 = vld [vmem:[%s185 + $0x70] sm:$0xff]
        %v240 = vld [vmem:[%s185 + $0x78] sm:$0xff]
        %241 = vst [vmem:[#allocation2] sm:$0x3] 0.0
        %242 = vst [vmem:[#allocation2 + $0x8] sm:$0x3] 0.0
        %243 = vst [vmem:[#allocation2 + $0x10] sm:$0x3] 0.0
        %244 = vst [vmem:[#allocation2 + $0x18] sm:$0x3] 0.0
        %245 = vst [vmem:[#allocation2 + $0x20] sm:$0x3] 0.0
        %246 = vst [vmem:[#allocation2 + $0x28] sm:$0x3] 0.0
        %247 = vst [vmem:[#allocation2 + $0x30] sm:$0x3] 0.0
        %248 = vst [vmem:[#allocation2 + $0x38] sm:$0x3] 0.0
        %v249 = vld [vmem:[%s185] sm:$0xff]
        %v250 = vld [vmem:[%s185 + $0x8] sm:$0xff]
        %v251 = vld [vmem:[%s185 + $0x10] sm:$0xff]
        %v252 = vld [vmem:[%s185 + $0x18] sm:$0xff]
        %v253 = vld [vmem:[%s185 + $0x20] sm:$0xff]
        %v254 = vld [vmem:[%s185 + $0x28] sm:$0xff]
        %v255 = vld [vmem:[%s185 + $0x30] sm:$0xff]
        %v256 = vld [vmem:[%s185 + $0x38] sm:$0xff]
        %v257 = vld [vmem:[%s185 + $0x40] sm:$0x3f]
        %v258 = vld [vmem:[%s185 + $0x48] sm:$0x3f]
        %v259 = vld [vmem:[%s185 + $0x50] sm:$0x3f]
        %v260 = vld [vmem:[%s185 + $0x58] sm:$0x3f]
        %v261 = vld [vmem:[%s185 + $0x60] sm:$0x3f]
        %v262 = vld [vmem:[%s185 + $0x68] sm:$0x3f]
        %v263 = vld [vmem:[%s185 + $0x70] sm:$0x3f]
        %v264 = vld [vmem:[%s185 + $0x78] sm:$0x3f]
        %vm281 = vcmask 1041408
        %v282 = vrot.slane %v249, 6
        %v283 = vrot.slane %v250, 6
        %v284 = vrot.slane %v251, 6
        %v285 = vrot.slane %v252, 6
        %v286 = vrot.slane %v253, 6
        %v287 = vrot.slane %v254, 6
        %v288 = vrot.slane %v255, 6
        %v289 = vrot.slane %v256, 6
        %v290 = vrot.slane %v257, 6
        %v291 = vsel %vm281, %v282, %v290
        %v292 = vrot.slane %v258, 6
        %v293 = vsel %vm281, %v283, %v292
        %v294 = vrot.slane %v259, 6
        %v295 = vsel %vm281, %v284, %v294
        %v296 = vrot.slane %v260, 6
        %v297 = vsel %vm281, %v285, %v296
        %v298 = vrot.slane %v261, 6
        %v299 = vsel %vm281, %v286, %v298
        %v300 = vrot.slane %v262, 6
        %v301 = vsel %vm281, %v287, %v300
        %v302 = vrot.slane %v263, 6
        %v303 = vsel %vm281, %v288, %v302
        %v304 = vrot.slane %v264, 6
        %v305 = vsel %vm281, %v289, %v304
        %322 = vst [vmem:[#allocation2] sm:$0xfc] %v282
        %323 = vst [vmem:[#allocation2 + $0x8] sm:$0xfc] %v283
        %324 = vst [vmem:[#allocation2 + $0x10] sm:$0xfc] %v284
        %325 = vst [vmem:[#allocation2 + $0x18] sm:$0xfc] %v285
        %326 = vst [vmem:[#allocation2 + $0x20] sm:$0xfc] %v286
        %327 = vst [vmem:[#allocation2 + $0x28] sm:$0xfc] %v287
        %328 = vst [vmem:[#allocation2 + $0x30] sm:$0xfc] %v288
        %329 = vst [vmem:[#allocation2 + $0x38] sm:$0xfc] %v289
        %330 = vst [vmem:[#allocation2 + $0x40] sm:$0xff] %v291
        %331 = vst [vmem:[#allocation2 + $0x48] sm:$0xff] %v293
        %332 = vst [vmem:[#allocation2 + $0x50] sm:$0xff] %v295
        %333 = vst [vmem:[#allocation2 + $0x58] sm:$0xff] %v297
        %334 = vst [vmem:[#allocation2 + $0x60] sm:$0xff] %v299
        %335 = vst [vmem:[#allocation2 + $0x68] sm:$0xff] %v301
        %336 = vst [vmem:[#allocation2 + $0x70] sm:$0xff] %v303
        %337 = vst [vmem:[#allocation2 + $0x78] sm:$0xff] %v305
        %s338 = scalar_lea.vmem [#allocation2], 128
        %339 = vst [vmem:[%s338] ss:$8 sm:$0xf] 0.0
        %340 = vst [vmem:[%s338] ss:$8 sm:$0xf0] 0.0
        %v341 = vld [vmem:[%s185] sm:$0xff]
        %v342 = vld [vmem:[%s185 + $0x8] sm:$0xff]
        %v343 = vld [vmem:[%s185 + $0x10] sm:$0xff]
        %v344 = vld [vmem:[%s185 + $0x18] sm:$0xff]
        %v345 = vld [vmem:[%s185 + $0x20] sm:$0xff]
        %v346 = vld [vmem:[%s185 + $0x28] sm:$0xff]
        %v347 = vld [vmem:[%s185 + $0x30] sm:$0xff]
        %v348 = vld [vmem:[%s185 + $0x38] sm:$0xff]
        %v349 = vld [vmem:[%s185 + $0x40] sm:$0x7f]
        %v350 = vld [vmem:[%s185 + $0x48] sm:$0x7f]
        %v351 = vld [vmem:[%s185 + $0x50] sm:$0x7f]
        %v352 = vld [vmem:[%s185 + $0x58] sm:$0x7f]
        %v353 = vld [vmem:[%s185 + $0x60] sm:$0x7f]
        %v354 = vld [vmem:[%s185 + $0x68] sm:$0x7f]
        %v355 = vld [vmem:[%s185 + $0x70] sm:$0x7f]
        %v356 = vld [vmem:[%s185 + $0x78] sm:$0x7f]
        %vm373 = vcmask 1040384
        %v374 = vrot.slane %v341, 7
        %v375 = vrot.slane %v342, 7
        %v376 = vrot.slane %v343, 7
        %v377 = vrot.slane %v344, 7
        %v378 = vrot.slane %v345, 7
        %v379 = vrot.slane %v346, 7
        %v380 = vrot.slane %v347, 7
        %v381 = vrot.slane %v348, 7
        %v382 = vrot.slane %v349, 7
        %v383 = vsel %vm373, %v374, %v382
        %v384 = vrot.slane %v350, 7
        %v385 = vsel %vm373, %v375, %v384
        %v386 = vrot.slane %v351, 7
        %v387 = vsel %vm373, %v376, %v386
        %v388 = vrot.slane %v352, 7
        %v389 = vsel %vm373, %v377, %v388
        %v390 = vrot.slane %v353, 7
        %v391 = vsel %vm373, %v378, %v390
        %v392 = vrot.slane %v354, 7
        %v393 = vsel %vm373, %v379, %v392
        %v394 = vrot.slane %v355, 7
        %v395 = vsel %vm373, %v380, %v394
        %v396 = vrot.slane %v356, 7
        %v397 = vsel %vm373, %v381, %v396
        %414 = vst [vmem:[%s338] sm:$0xfe] %v374
        %415 = vst [vmem:[%s338 + $0x8] sm:$0xfe] %v375
        %416 = vst [vmem:[%s338 + $0x10] sm:$0xfe] %v376
        %417 = vst [vmem:[%s338 + $0x18] sm:$0xfe] %v377
        %418 = vst [vmem:[%s338 + $0x20] sm:$0xfe] %v378
        %419 = vst [vmem:[%s338 + $0x28] sm:$0xfe] %v379
        %420 = vst [vmem:[%s338 + $0x30] sm:$0xfe] %v380
        %421 = vst [vmem:[%s338 + $0x38] sm:$0xfe] %v381
        %422 = vst [vmem:[%s338 + $0x40] sm:$0xff] %v383
        %423 = vst [vmem:[%s338 + $0x48] sm:$0xff] %v385
        %424 = vst [vmem:[%s338 + $0x50] sm:$0xff] %v387
        %425 = vst [vmem:[%s338 + $0x58] sm:$0xff] %v389
        %426 = vst [vmem:[%s338 + $0x60] sm:$0xff] %v391
        %427 = vst [vmem:[%s338 + $0x68] sm:$0xff] %v393
        %428 = vst [vmem:[%s338 + $0x70] sm:$0xff] %v395
        %429 = vst [vmem:[%s338 + $0x78] sm:$0xff] %v397
        %v430 = vld [vmem:[%s185] sm:$0xfe]
        %v431 = vld [vmem:[%s185 + $0x8] sm:$0xfe]
        %v432 = vld [vmem:[%s185 + $0x10] sm:$0xfe]
        %v433 = vld [vmem:[%s185 + $0x18] sm:$0xfe]
        %v434 = vld [vmem:[%s185 + $0x20] sm:$0xfe]
        %v435 = vld [vmem:[%s185 + $0x28] sm:$0xfe]
        %v436 = vld [vmem:[%s185 + $0x30] sm:$0xfe]
        %v437 = vld [vmem:[%s185 + $0x38] sm:$0xfe]
        %v438 = vld [vmem:[%s185 + $0x40] sm:$0xff]
        %v439 = vld [vmem:[%s185 + $0x48] sm:$0xff]
        %v440 = vld [vmem:[%s185 + $0x50] sm:$0xff]
        %v441 = vld [vmem:[%s185 + $0x58] sm:$0xff]
        %v442 = vld [vmem:[%s185 + $0x60] sm:$0xff]
        %v443 = vld [vmem:[%s185 + $0x68] sm:$0xff]
        %v444 = vld [vmem:[%s185 + $0x70] sm:$0xff]
        %v445 = vld [vmem:[%s185 + $0x78] sm:$0xff]
        %vm462 = vcmask 1046528
        %v463 = vrot.slane %v430, 1
        %v464 = vrot.slane %v438, 1
        %v465 = vsel %vm462, %v463, %v464
        %v466 = vrot.slane %v431, 1
        %v467 = vrot.slane %v439, 1
        %v468 = vsel %vm462, %v466, %v467
        %v469 = vrot.slane %v432, 1
        %v470 = vrot.slane %v440, 1
        %v471 = vsel %vm462, %v469, %v470
        %v472 = vrot.slane %v433, 1
        %v473 = vrot.slane %v441, 1
        %v474 = vsel %vm462, %v472, %v473
        %v475 = vrot.slane %v434, 1
        %v476 = vrot.slane %v442, 1
        %v477 = vsel %vm462, %v475, %v476
        %v478 = vrot.slane %v435, 1
        %v479 = vrot.slane %v443, 1
        %v480 = vsel %vm462, %v478, %v479
        %v481 = vrot.slane %v436, 1
        %v482 = vrot.slane %v444, 1
        %v483 = vsel %vm462, %v481, %v482
        %v484 = vrot.slane %v437, 1
        %v485 = vrot.slane %v445, 1
        %v486 = vsel %vm462, %v484, %v485
        %s503 = scalar_lea.vmem [#allocation2], 384
        %504 = vst [vmem:[%s503] sm:$0xff] %v465
        %505 = vst [vmem:[%s503 + $0x8] sm:$0xff] %v468
        %506 = vst [vmem:[%s503 + $0x10] sm:$0xff] %v471
        %507 = vst [vmem:[%s503 + $0x18] sm:$0xff] %v474
        %508 = vst [vmem:[%s503 + $0x20] sm:$0xff] %v477
        %509 = vst [vmem:[%s503 + $0x28] sm:$0xff] %v480
        %510 = vst [vmem:[%s503 + $0x30] sm:$0xff] %v483
        %511 = vst [vmem:[%s503 + $0x38] sm:$0xff] %v486
        %512 = vst [vmem:[%s503 + $0x40] sm:$0x7f] %v464
        %513 = vst [vmem:[%s503 + $0x48] sm:$0x7f] %v467
        %514 = vst [vmem:[%s503 + $0x50] sm:$0x7f] %v470
        %515 = vst [vmem:[%s503 + $0x58] sm:$0x7f] %v473
        %516 = vst [vmem:[%s503 + $0x60] sm:$0x7f] %v476
        %517 = vst [vmem:[%s503 + $0x68] sm:$0x7f] %v479
        %518 = vst [vmem:[%s503 + $0x70] sm:$0x7f] %v482
        %519 = vst [vmem:[%s503 + $0x78] sm:$0x7f] %v485
        %s520 = scalar_lea.vmem %s503, 71 [#allocation2]
        %521 = vst [vmem:[%s520] ss:$8 sm:$0xf] 0.0
        %522 = vst [vmem:[%s520] ss:$8 sm:$0xf0] 0.0
        %v523 = vld [vmem:[%s185] sm:$0xfc]
        %v524 = vld [vmem:[%s185 + $0x8] sm:$0xfc]
        %v525 = vld [vmem:[%s185 + $0x10] sm:$0xfc]
        %v526 = vld [vmem:[%s185 + $0x18] sm:$0xfc]
        %v527 = vld [vmem:[%s185 + $0x20] sm:$0xfc]
        %v528 = vld [vmem:[%s185 + $0x28] sm:$0xfc]
        %v529 = vld [vmem:[%s185 + $0x30] sm:$0xfc]
        %v530 = vld [vmem:[%s185 + $0x38] sm:$0xfc]
        %v531 = vld [vmem:[%s185 + $0x40] sm:$0xff]
        %v532 = vld [vmem:[%s185 + $0x48] sm:$0xff]
        %v533 = vld [vmem:[%s185 + $0x50] sm:$0xff]
        %v534 = vld [vmem:[%s185 + $0x58] sm:$0xff]
        %v535 = vld [vmem:[%s185 + $0x60] sm:$0xff]
        %v536 = vld [vmem:[%s185 + $0x68] sm:$0xff]
        %v537 = vld [vmem:[%s185 + $0x70] sm:$0xff]
        %v538 = vld [vmem:[%s185 + $0x78] sm:$0xff]
        %vm555 = vcmask 1045504
        %v556 = vrot.slane %v523, 2
        %v557 = vrot.slane %v531, 2
        %v558 = vsel %vm555, %v556, %v557
        %v559 = vrot.slane %v524, 2
        %v560 = vrot.slane %v532, 2
        %v561 = vsel %vm555, %v559, %v560
        %v562 = vrot.slane %v525, 2
        %v563 = vrot.slane %v533, 2
        %v564 = vsel %vm555, %v562, %v563
        %v565 = vrot.slane %v526, 2
        %v566 = vrot.slane %v534, 2
        %v567 = vsel %vm555, %v565, %v566
        %v568 = vrot.slane %v527, 2
        %v569 = vrot.slane %v535, 2
        %v570 = vsel %vm555, %v568, %v569
        %v571 = vrot.slane %v528, 2
        %v572 = vrot.slane %v536, 2
        %v573 = vsel %vm555, %v571, %v572
        %v574 = vrot.slane %v529, 2
        %v575 = vrot.slane %v537, 2
        %v576 = vsel %vm555, %v574, %v575
        %v577 = vrot.slane %v530, 2
        %v578 = vrot.slane %v538, 2
        %v579 = vsel %vm555, %v577, %v578
        %s596 = scalar_lea.vmem [#allocation2], 512
        %597 = vst [vmem:[%s596] sm:$0xff] %v558
        %598 = vst [vmem:[%s596 + $0x8] sm:$0xff] %v561
        %599 = vst [vmem:[%s596 + $0x10] sm:$0xff] %v564
        %600 = vst [vmem:[%s596 + $0x18] sm:$0xff] %v567
        %601 = vst [vmem:[%s596 + $0x20] sm:$0xff] %v570
        %602 = vst [vmem:[%s596 + $0x28] sm:$0xff] %v573
        %603 = vst [vmem:[%s596 + $0x30] sm:$0xff] %v576
        %604 = vst [vmem:[%s596 + $0x38] sm:$0xff] %v579
        %605 = vst [vmem:[%s596 + $0x40] sm:$0x3f] %v557
        %606 = vst [vmem:[%s596 + $0x48] sm:$0x3f] %v560
        %607 = vst [vmem:[%s596 + $0x50] sm:$0x3f] %v563
        %608 = vst [vmem:[%s596 + $0x58] sm:$0x3f] %v566
        %609 = vst [vmem:[%s596 + $0x60] sm:$0x3f] %v569
        %610 = vst [vmem:[%s596 + $0x68] sm:$0x3f] %v572
        %611 = vst [vmem:[%s596 + $0x70] sm:$0x3f] %v575
        %612 = vst [vmem:[%s596 + $0x78] sm:$0x3f] %v578
        %613 = vst [vmem:[%s596 + $0x40] sm:$0xc0] 0.0
        %614 = vst [vmem:[%s596 + $0x48] sm:$0xc0] 0.0
        %615 = vst [vmem:[%s596 + $0x50] sm:$0xc0] 0.0
        %616 = vst [vmem:[%s596 + $0x58] sm:$0xc0] 0.0
        %617 = vst [vmem:[%s596 + $0x60] sm:$0xc0] 0.0
        %618 = vst [vmem:[%s596 + $0x68] sm:$0xc0] 0.0
        %619 = vst [vmem:[%s596 + $0x70] sm:$0xc0] 0.0
        %620 = vst [vmem:[%s596 + $0x78] sm:$0xc0] 0.0
        %v621 = vld [vmem:[#allocation8] sm:$0xff]
        %v623 = vlaneseq
        %v624 = vshrl.u32 %v623, 7
        %v625 = vsub.s32 0, %v624
        %v626 = vrot.slane %v621, %v625
        %v627 = vlaneseq
        %v628 = vshrl.u32 %v627, 7
        %v629 = vsub.s32 1, %v628
        %v630 = vrot.slane %v621, %v629
        %v631 = vlaneseq
        %v632 = vshrl.u32 %v631, 7
        %v633 = vsub.s32 2, %v632
        %v634 = vrot.slane %v621, %v633
        %v635 = vlaneseq
        %v636 = vshrl.u32 %v635, 7
        %v637 = vsub.s32 3, %v636
        %v638 = vrot.slane %v621, %v637
        %v639 = vlaneseq
        %v640 = vshrl.u32 %v639, 7
        %v641 = vsub.s32 4, %v640
        %v642 = vrot.slane %v621, %v641
        %v643 = vlaneseq
        %v644 = vshrl.u32 %v643, 7
        %v645 = vsub.s32 5, %v644
        %v646 = vrot.slane %v621, %v645
        %v647 = vlaneseq
        %v648 = vshrl.u32 %v647, 7
        %v649 = vsub.s32 6, %v648
        %v650 = vrot.slane %v621, %v649
        %v651 = vlaneseq
        %v652 = vshrl.u32 %v651, 7
        %v653 = vsub.s32 7, %v652
        %v654 = vrot.slane %v621, %v653
        %s663 = scalar_lea.vmem [#allocation6], 66
        %v664 = vld [vmem:[%s663] ss:$8 sm:$0xf]
        %v665 = vld [vmem:[%s663] ss:$8 sm:$0xf0]
        %v666 = vor.u32 %v664, %v665
        %v668 = vlaneseq
        %v669 = vshrl.u32 %v668, 7
        %v670 = vsub.s32 0, %v669
        %v671 = vrot.slane %v666, %v670
        %v672 = vlaneseq
        %v673 = vshrl.u32 %v672, 7
        %v674 = vsub.s32 1, %v673
        %v675 = vrot.slane %v666, %v674
        %v676 = vlaneseq
        %v677 = vshrl.u32 %v676, 7
        %v678 = vsub.s32 2, %v677
        %v679 = vrot.slane %v666, %v678
        %v680 = vlaneseq
        %v681 = vshrl.u32 %v680, 7
        %v682 = vsub.s32 3, %v681
        %v683 = vrot.slane %v666, %v682
        %v684 = vlaneseq
        %v685 = vshrl.u32 %v684, 7
        %v686 = vsub.s32 4, %v685
        %v687 = vrot.slane %v666, %v686
        %v688 = vlaneseq
        %v689 = vshrl.u32 %v688, 7
        %v690 = vsub.s32 5, %v689
        %v691 = vrot.slane %v666, %v690
        %v692 = vlaneseq
        %v693 = vshrl.u32 %v692, 7
        %v694 = vsub.s32 6, %v693
        %v695 = vrot.slane %v666, %v694
        %v696 = vlaneseq
        %v697 = vshrl.u32 %v696, 7
        %v698 = vsub.s32 7, %v697
        %v699 = vrot.slane %v666, %v698
        %v708 = vmul.f32 %v225, %v671
        %v709 = vmul.f32 %v226, %v675
        %v710 = vmul.f32 %v227, %v679
        %v711 = vmul.f32 %v228, %v683
        %v712 = vmul.f32 %v229, %v687
        %v713 = vmul.f32 %v230, %v691
        %v714 = vmul.f32 %v231, %v695
        %v715 = vmul.f32 %v232, %v699
        %v716 = vmul.f32 %v233, %v671
        %v717 = vmul.f32 %v234, %v675
        %v718 = vmul.f32 %v235, %v679
        %v719 = vmul.f32 %v236, %v683
        %v720 = vmul.f32 %v237, %v687
        %v721 = vmul.f32 %v238, %v691
        %v722 = vmul.f32 %v239, %v695
        %v723 = vmul.f32 %v240, %v699
        %v724 = vld [vmem:[#allocation2] sm:$0xff]
        %v725 = vld [vmem:[#allocation2 + $0x8] sm:$0xff]
        %v726 = vld [vmem:[#allocation2 + $0x10] sm:$0xff]
        %v727 = vld [vmem:[#allocation2 + $0x18] sm:$0xff]
        %v728 = vld [vmem:[#allocation2 + $0x20] sm:$0xff]
        %v729 = vld [vmem:[#allocation2 + $0x28] sm:$0xff]
        %v730 = vld [vmem:[#allocation2 + $0x30] sm:$0xff]
        %v731 = vld [vmem:[#allocation2 + $0x38] sm:$0xff]
        %v732 = vld [vmem:[#allocation2 + $0x40] sm:$0xff]
        %v733 = vld [vmem:[#allocation2 + $0x48] sm:$0xff]
        %v734 = vld [vmem:[#allocation2 + $0x50] sm:$0xff]
        %v735 = vld [vmem:[#allocation2 + $0x58] sm:$0xff]
        %v736 = vld [vmem:[#allocation2 + $0x60] sm:$0xff]
        %v737 = vld [vmem:[#allocation2 + $0x68] sm:$0xff]
        %v738 = vld [vmem:[#allocation2 + $0x70] sm:$0xff]
        %v739 = vld [vmem:[#allocation2 + $0x78] sm:$0xff]
        %v740 = vld [vmem:[#allocation6] ss:$8 sm:$0xf]
        %v741 = vld [vmem:[#allocation6] ss:$8 sm:$0xf0]
        %v742 = vor.u32 %v740, %v741
        %v744 = vlaneseq
        %v745 = vshrl.u32 %v744, 7
        %v746 = vsub.s32 0, %v745
        %v747 = vrot.slane %v742, %v746
        %v748 = vlaneseq
        %v749 = vshrl.u32 %v748, 7
        %v750 = vsub.s32 1, %v749
        %v751 = vrot.slane %v742, %v750
        %v752 = vlaneseq
        %v753 = vshrl.u32 %v752, 7
        %v754 = vsub.s32 2, %v753
        %v755 = vrot.slane %v742, %v754
        %v756 = vlaneseq
        %v757 = vshrl.u32 %v756, 7
        %v758 = vsub.s32 3, %v757
        %v759 = vrot.slane %v742, %v758
        %v760 = vlaneseq
        %v761 = vshrl.u32 %v760, 7
        %v762 = vsub.s32 4, %v761
        %v763 = vrot.slane %v742, %v762
        %v764 = vlaneseq
        %v765 = vshrl.u32 %v764, 7
        %v766 = vsub.s32 5, %v765
        %v767 = vrot.slane %v742, %v766
        %v768 = vlaneseq
        %v769 = vshrl.u32 %v768, 7
        %v770 = vsub.s32 6, %v769
        %v771 = vrot.slane %v742, %v770
        %v772 = vlaneseq
        %v773 = vshrl.u32 %v772, 7
        %v774 = vsub.s32 7, %v773
        %v775 = vrot.slane %v742, %v774
        %v784 = vmul.f32 %v724, %v747
        %v785 = vmul.f32 %v725, %v751
        %v786 = vmul.f32 %v726, %v755
        %v787 = vmul.f32 %v727, %v759
        %v788 = vmul.f32 %v728, %v763
        %v789 = vmul.f32 %v729, %v767
        %v790 = vmul.f32 %v730, %v771
        %v791 = vmul.f32 %v731, %v775
        %v792 = vmul.f32 %v732, %v747
        %v793 = vmul.f32 %v733, %v751
        %v794 = vmul.f32 %v734, %v755
        %v795 = vmul.f32 %v735, %v759
        %v796 = vmul.f32 %v736, %v763
        %v797 = vmul.f32 %v737, %v767
        %v798 = vmul.f32 %v738, %v771
        %v799 = vmul.f32 %v739, %v775
        %v800 = vadd.f32 %v708, %v784
        %v801 = vadd.f32 %v709, %v785
        %v802 = vadd.f32 %v710, %v786
        %v803 = vadd.f32 %v711, %v787
        %v804 = vadd.f32 %v712, %v788
        %v805 = vadd.f32 %v713, %v789
        %v806 = vadd.f32 %v714, %v790
        %v807 = vadd.f32 %v715, %v791
        %v808 = vadd.f32 %v716, %v792
        %v809 = vadd.f32 %v717, %v793
        %v810 = vadd.f32 %v718, %v794
        %v811 = vadd.f32 %v719, %v795
        %v812 = vadd.f32 %v720, %v796
        %v813 = vadd.f32 %v721, %v797
        %v814 = vadd.f32 %v722, %v798
        %v815 = vadd.f32 %v723, %v799
        %v816 = vld [vmem:[%s338] sm:$0xff]
        %v817 = vld [vmem:[%s338 + $0x8] sm:$0xff]
        %v818 = vld [vmem:[%s338 + $0x10] sm:$0xff]
        %v819 = vld [vmem:[%s338 + $0x18] sm:$0xff]
        %v820 = vld [vmem:[%s338 + $0x20] sm:$0xff]
        %v821 = vld [vmem:[%s338 + $0x28] sm:$0xff]
        %v822 = vld [vmem:[%s338 + $0x30] sm:$0xff]
        %v823 = vld [vmem:[%s338 + $0x38] sm:$0xff]
        %v824 = vld [vmem:[%s338 + $0x40] sm:$0xff]
        %v825 = vld [vmem:[%s338 + $0x48] sm:$0xff]
        %v826 = vld [vmem:[%s338 + $0x50] sm:$0xff]
        %v827 = vld [vmem:[%s338 + $0x58] sm:$0xff]
        %v828 = vld [vmem:[%s338 + $0x60] sm:$0xff]
        %v829 = vld [vmem:[%s338 + $0x68] sm:$0xff]
        %v830 = vld [vmem:[%s338 + $0x70] sm:$0xff]
        %v831 = vld [vmem:[%s338 + $0x78] sm:$0xff]
        %s832 = scalar_lea.vmem [#allocation6], 5
        %v833 = vld [vmem:[%s832] ss:$8 sm:$0xf]
        %v834 = vld [vmem:[%s832] ss:$8 sm:$0xf0]
        %v835 = vor.u32 %v833, %v834
        %v837 = vlaneseq
        %v838 = vshrl.u32 %v837, 7
        %v839 = vsub.s32 0, %v838
        %v840 = vrot.slane %v835, %v839
        %v841 = vlaneseq
        %v842 = vshrl.u32 %v841, 7
        %v843 = vsub.s32 1, %v842
        %v844 = vrot.slane %v835, %v843
        %v845 = vlaneseq
        %v846 = vshrl.u32 %v845, 7
        %v847 = vsub.s32 2, %v846
        %v848 = vrot.slane %v835, %v847
        %v849 = vlaneseq
        %v850 = vshrl.u32 %v849, 7
        %v851 = vsub.s32 3, %v850
        %v852 = vrot.slane %v835, %v851
        %v853 = vlaneseq
        %v854 = vshrl.u32 %v853, 7
        %v855 = vsub.s32 4, %v854
        %v856 = vrot.slane %v835, %v855
        %v857 = vlaneseq
        %v858 = vshrl.u32 %v857, 7
        %v859 = vsub.s32 5, %v858
        %v860 = vrot.slane %v835, %v859
        %v861 = vlaneseq
        %v862 = vshrl.u32 %v861, 7
        %v863 = vsub.s32 6, %v862
        %v864 = vrot.slane %v835, %v863
        %v865 = vlaneseq
        %v866 = vshrl.u32 %v865, 7
        %v867 = vsub.s32 7, %v866
        %v868 = vrot.slane %v835, %v867
        %v877 = vmul.f32 %v816, %v840
        %v878 = vmul.f32 %v817, %v844
        %v879 = vmul.f32 %v818, %v848
        %v880 = vmul.f32 %v819, %v852
        %v881 = vmul.f32 %v820, %v856
        %v882 = vmul.f32 %v821, %v860
        %v883 = vmul.f32 %v822, %v864
        %v884 = vmul.f32 %v823, %v868
        %v885 = vmul.f32 %v824, %v840
        %v886 = vmul.f32 %v825, %v844
        %v887 = vmul.f32 %v826, %v848
        %v888 = vmul.f32 %v827, %v852
        %v889 = vmul.f32 %v828, %v856
        %v890 = vmul.f32 %v829, %v860
        %v891 = vmul.f32 %v830, %v864
        %v892 = vmul.f32 %v831, %v868
        %v893 = vadd.f32 %v800, %v877
        %v894 = vadd.f32 %v801, %v878
        %v895 = vadd.f32 %v802, %v879
        %v896 = vadd.f32 %v803, %v880
        %v897 = vadd.f32 %v804, %v881
        %v898 = vadd.f32 %v805, %v882
        %v899 = vadd.f32 %v806, %v883
        %v900 = vadd.f32 %v807, %v884
        %v901 = vadd.f32 %v808, %v885
        %v902 = vadd.f32 %v809, %v886
        %v903 = vadd.f32 %v810, %v887
        %v904 = vadd.f32 %v811, %v888
        %v905 = vadd.f32 %v812, %v889
        %v906 = vadd.f32 %v813, %v890
        %v907 = vadd.f32 %v814, %v891
        %v908 = vadd.f32 %v815, %v892
        %v909 = vld [vmem:[%s503] sm:$0xff]
        %v910 = vld [vmem:[%s503 + $0x8] sm:$0xff]
        %v911 = vld [vmem:[%s503 + $0x10] sm:$0xff]
        %v912 = vld [vmem:[%s503 + $0x18] sm:$0xff]
        %v913 = vld [vmem:[%s503 + $0x20] sm:$0xff]
        %v914 = vld [vmem:[%s503 + $0x28] sm:$0xff]
        %v915 = vld [vmem:[%s503 + $0x30] sm:$0xff]
        %v916 = vld [vmem:[%s503 + $0x38] sm:$0xff]
        %v917 = vld [vmem:[%s503 + $0x40] sm:$0xff]
        %v918 = vld [vmem:[%s503 + $0x48] sm:$0xff]
        %v919 = vld [vmem:[%s503 + $0x50] sm:$0xff]
        %v920 = vld [vmem:[%s503 + $0x58] sm:$0xff]
        %v921 = vld [vmem:[%s503 + $0x60] sm:$0xff]
        %v922 = vld [vmem:[%s503 + $0x68] sm:$0xff]
        %v923 = vld [vmem:[%s503 + $0x70] sm:$0xff]
        %v924 = vld [vmem:[%s503 + $0x78] sm:$0xff]
        %s925 = scalar_lea.vmem [#allocation6], 71
        %v926 = vld [vmem:[%s925] ss:$8 sm:$0xf]
        %v927 = vld [vmem:[%s925] ss:$8 sm:$0xf0]
        %v928 = vor.u32 %v926, %v927
        %v930 = vlaneseq
        %v931 = vshrl.u32 %v930, 7
        %v932 = vsub.s32 0, %v931
        %v933 = vrot.slane %v928, %v932
        %v934 = vlaneseq
        %v935 = vshrl.u32 %v934, 7
        %v936 = vsub.s32 1, %v935
        %v937 = vrot.slane %v928, %v936
        %v938 = vlaneseq
        %v939 = vshrl.u32 %v938, 7
        %v940 = vsub.s32 2, %v939
        %v941 = vrot.slane %v928, %v940
        %v942 = vlaneseq
        %v943 = vshrl.u32 %v942, 7
        %v944 = vsub.s32 3, %v943
        %v945 = vrot.slane %v928, %v944
        %v946 = vlaneseq
        %v947 = vshrl.u32 %v946, 7
        %v948 = vsub.s32 4, %v947
        %v949 = vrot.slane %v928, %v948
        %v950 = vlaneseq
        %v951 = vshrl.u32 %v950, 7
        %v952 = vsub.s32 5, %v951
        %v953 = vrot.slane %v928, %v952
        %v954 = vlaneseq
        %v955 = vshrl.u32 %v954, 7
        %v956 = vsub.s32 6, %v955
        %v957 = vrot.slane %v928, %v956
        %v958 = vlaneseq
        %v959 = vshrl.u32 %v958, 7
        %v960 = vsub.s32 7, %v959
        %v961 = vrot.slane %v928, %v960
        %v970 = vmul.f32 %v909, %v933
        %v971 = vmul.f32 %v910, %v937
        %v972 = vmul.f32 %v911, %v941
        %v973 = vmul.f32 %v912, %v945
        %v974 = vmul.f32 %v913, %v949
        %v975 = vmul.f32 %v914, %v953
        %v976 = vmul.f32 %v915, %v957
        %v977 = vmul.f32 %v916, %v961
        %v978 = vmul.f32 %v917, %v933
        %v979 = vmul.f32 %v918, %v937
        %v980 = vmul.f32 %v919, %v941
        %v981 = vmul.f32 %v920, %v945
        %v982 = vmul.f32 %v921, %v949
        %v983 = vmul.f32 %v922, %v953
        %v984 = vmul.f32 %v923, %v957
        %v985 = vmul.f32 %v924, %v961
        %v986 = vadd.f32 %v893, %v970
        %v987 = vadd.f32 %v894, %v971
        %v988 = vadd.f32 %v895, %v972
        %v989 = vadd.f32 %v896, %v973
        %v990 = vadd.f32 %v897, %v974
        %v991 = vadd.f32 %v898, %v975
        %v992 = vadd.f32 %v899, %v976
        %v993 = vadd.f32 %v900, %v977
        %v994 = vadd.f32 %v901, %v978
        %v995 = vadd.f32 %v902, %v979
        %v996 = vadd.f32 %v903, %v980
        %v997 = vadd.f32 %v904, %v981
        %v998 = vadd.f32 %v905, %v982
        %v999 = vadd.f32 %v906, %v983
        %v1000 = vadd.f32 %v907, %v984
        %v1001 = vadd.f32 %v908, %v985
        %v1002 = vld [vmem:[%s596] sm:$0xff]
        %v1003 = vld [vmem:[%s596 + $0x8] sm:$0xff]
        %v1004 = vld [vmem:[%s596 + $0x10] sm:$0xff]
        %v1005 = vld [vmem:[%s596 + $0x18] sm:$0xff]
        %v1006 = vld [vmem:[%s596 + $0x20] sm:$0xff]
        %v1007 = vld [vmem:[%s596 + $0x28] sm:$0xff]
        %v1008 = vld [vmem:[%s596 + $0x30] sm:$0xff]
        %v1009 = vld [vmem:[%s596 + $0x38] sm:$0xff]
        %v1010 = vld [vmem:[%s596 + $0x40] sm:$0xff]
        %v1011 = vld [vmem:[%s596 + $0x48] sm:$0xff]
        %v1012 = vld [vmem:[%s596 + $0x50] sm:$0xff]
        %v1013 = vld [vmem:[%s596 + $0x58] sm:$0xff]
        %v1014 = vld [vmem:[%s596 + $0x60] sm:$0xff]
        %v1015 = vld [vmem:[%s596 + $0x68] sm:$0xff]
        %v1016 = vld [vmem:[%s596 + $0x70] sm:$0xff]
        %v1017 = vld [vmem:[%s596 + $0x78] sm:$0xff]
        %s1018 = scalar_lea.vmem [#allocation6], 132
        %v1019 = vld [vmem:[%s1018] ss:$8 sm:$0xf]
        %v1020 = vld [vmem:[%s1018] ss:$8 sm:$0xf0]
        %v1021 = vor.u32 %v1019, %v1020
        %v1023 = vlaneseq
        %v1024 = vshrl.u32 %v1023, 7
        %v1025 = vsub.s32 0, %v1024
        %v1026 = vrot.slane %v1021, %v1025
        %v1027 = vlaneseq
        %v1028 = vshrl.u32 %v1027, 7
        %v1029 = vsub.s32 1, %v1028
        %v1030 = vrot.slane %v1021, %v1029
        %v1031 = vlaneseq
        %v1032 = vshrl.u32 %v1031, 7
        %v1033 = vsub.s32 2, %v1032
        %v1034 = vrot.slane %v1021, %v1033
        %v1035 = vlaneseq
        %v1036 = vshrl.u32 %v1035, 7
        %v1037 = vsub.s32 3, %v1036
        %v1038 = vrot.slane %v1021, %v1037
        %v1039 = vlaneseq
        %v1040 = vshrl.u32 %v1039, 7
        %v1041 = vsub.s32 4, %v1040
        %v1042 = vrot.slane %v1021, %v1041
        %v1043 = vlaneseq
        %v1044 = vshrl.u32 %v1043, 7
        %v1045 = vsub.s32 5, %v1044
        %v1046 = vrot.slane %v1021, %v1045
        %v1047 = vlaneseq
        %v1048 = vshrl.u32 %v1047, 7
        %v1049 = vsub.s32 6, %v1048
        %v1050 = vrot.slane %v1021, %v1049
        %v1051 = vlaneseq
        %v1052 = vshrl.u32 %v1051, 7
        %v1053 = vsub.s32 7, %v1052
        %v1054 = vrot.slane %v1021, %v1053
        %v1063 = vmul.f32 %v1002, %v1026
        %v1064 = vmul.f32 %v1003, %v1030
        %v1065 = vmul.f32 %v1004, %v1034
        %v1066 = vmul.f32 %v1005, %v1038
        %v1067 = vmul.f32 %v1006, %v1042
        %v1068 = vmul.f32 %v1007, %v1046
        %v1069 = vmul.f32 %v1008, %v1050
        %v1070 = vmul.f32 %v1009, %v1054
        %v1071 = vmul.f32 %v1010, %v1026
        %v1072 = vmul.f32 %v1011, %v1030
        %v1073 = vmul.f32 %v1012, %v1034
        %v1074 = vmul.f32 %v1013, %v1038
        %v1075 = vmul.f32 %v1014, %v1042
        %v1076 = vmul.f32 %v1015, %v1046
        %v1077 = vmul.f32 %v1016, %v1050
        %v1078 = vmul.f32 %v1017, %v1054
        %v1079 = vadd.f32 %v986, %v1063
        %v1080 = vadd.f32 %v987, %v1064
        %v1081 = vadd.f32 %v988, %v1065
        %v1082 = vadd.f32 %v989, %v1066
        %v1083 = vadd.f32 %v990, %v1067
        %v1084 = vadd.f32 %v991, %v1068
        %v1085 = vadd.f32 %v992, %v1069
        %v1086 = vadd.f32 %v993, %v1070
        %v1087 = vadd.f32 %v994, %v1071
        %v1088 = vadd.f32 %v995, %v1072
        %v1089 = vadd.f32 %v996, %v1073
        %v1090 = vadd.f32 %v997, %v1074
        %v1091 = vadd.f32 %v998, %v1075
        %v1092 = vadd.f32 %v999, %v1076
        %v1093 = vadd.f32 %v1000, %v1077
        %v1094 = vadd.f32 %v1001, %v1078
        %vm1095 = vcmp.ge.s32.totalorder %v217, 128
        %vm1096 = vcmp.ge.s32.totalorder %v218, 128
        %vm1097 = vcmp.ge.s32.totalorder %v219, 128
        %vm1098 = vcmp.ge.s32.totalorder %v220, 128
        %vm1099 = vcmp.ge.s32.totalorder %v221, 128
        %vm1100 = vcmp.ge.s32.totalorder %v222, 128
        %vm1101 = vcmp.ge.s32.totalorder %v223, 128
        %vm1102 = vcmp.ge.s32.totalorder %v224, 128
        %v1103 = vsel %vm1095, %v1086, 0.0
        %v1104 = vsel %vm1096, %v1079, 0.0
        %v1105 = vsel %vm1097, %v1080, 0.0
        %v1106 = vsel %vm1098, %v1081, 0.0
        %v1107 = vsel %vm1099, %v1082, 0.0
        %v1108 = vsel %vm1100, %v1083, 0.0
        %v1109 = vsel %vm1101, %v1084, 0.0
        %v1110 = vsel %vm1102, %v1085, 0.0
        %v1111 = vsel %vm1095, %v1094, 0.0
        %v1112 = vsel %vm1096, %v1087, 0.0
        %v1113 = vsel %vm1097, %v1088, 0.0
        %v1114 = vsel %vm1098, %v1089, 0.0
        %v1115 = vsel %vm1099, %v1090, 0.0
        %v1116 = vsel %vm1100, %v1091, 0.0
        %v1117 = vsel %vm1101, %v1092, 0.0
        %v1118 = vsel %vm1102, %v1093, 0.0
        %v1119 = vadd.f32 %v626, %v1103
        %v1120 = vadd.f32 %v630, %v1104
        %v1121 = vadd.f32 %v634, %v1105
        %v1122 = vadd.f32 %v638, %v1106
        %v1123 = vadd.f32 %v642, %v1107
        %v1124 = vadd.f32 %v646, %v1108
        %v1125 = vadd.f32 %v650, %v1109
        %v1126 = vadd.f32 %v654, %v1110
        %v1127 = vadd.f32 %v626, %v1111
        %v1128 = vadd.f32 %v630, %v1112
        %v1129 = vadd.f32 %v634, %v1113
        %v1130 = vadd.f32 %v638, %v1114
        %v1131 = vadd.f32 %v642, %v1115
        %v1132 = vadd.f32 %v646, %v1116
        %v1133 = vadd.f32 %v650, %v1117
        %v1134 = vadd.f32 %v654, %v1118
        %s1135 = scalar_lea.vmem [#allocation6], 67
        %v1136 = vld [vmem:[%s1135] ss:$8 sm:$0xf]
        %v1137 = vld [vmem:[%s1135] ss:$8 sm:$0xf0]
        %v1138 = vor.u32 %v1136, %v1137
        %v1140 = vlaneseq
        %v1141 = vshrl.u32 %v1140, 7
        %v1142 = vsub.s32 0, %v1141
        %v1143 = vrot.slane %v1138, %v1142
        %v1144 = vlaneseq
        %v1145 = vshrl.u32 %v1144, 7
        %v1146 = vsub.s32 1, %v1145
        %v1147 = vrot.slane %v1138, %v1146
        %v1148 = vlaneseq
        %v1149 = vshrl.u32 %v1148, 7
        %v1150 = vsub.s32 2, %v1149
        %v1151 = vrot.slane %v1138, %v1150
        %v1152 = vlaneseq
        %v1153 = vshrl.u32 %v1152, 7
        %v1154 = vsub.s32 3, %v1153
        %v1155 = vrot.slane %v1138, %v1154
        %v1156 = vlaneseq
        %v1157 = vshrl.u32 %v1156, 7
        %v1158 = vsub.s32 4, %v1157
        %v1159 = vrot.slane %v1138, %v1158
        %v1160 = vlaneseq
        %v1161 = vshrl.u32 %v1160, 7
        %v1162 = vsub.s32 5, %v1161
        %v1163 = vrot.slane %v1138, %v1162
        %v1164 = vlaneseq
        %v1165 = vshrl.u32 %v1164, 7
        %v1166 = vsub.s32 6, %v1165
        %v1167 = vrot.slane %v1138, %v1166
        %v1168 = vlaneseq
        %v1169 = vshrl.u32 %v1168, 7
        %v1170 = vsub.s32 7, %v1169
        %v1171 = vrot.slane %v1138, %v1170
        %v1180 = vmul.f32 %v225, %v1143
        %v1181 = vmul.f32 %v226, %v1147
        %v1182 = vmul.f32 %v227, %v1151
        %v1183 = vmul.f32 %v228, %v1155
        %v1184 = vmul.f32 %v229, %v1159
        %v1185 = vmul.f32 %v230, %v1163
        %v1186 = vmul.f32 %v231, %v1167
        %v1187 = vmul.f32 %v232, %v1171
        %v1188 = vmul.f32 %v233, %v1143
        %v1189 = vmul.f32 %v234, %v1147
        %v1190 = vmul.f32 %v235, %v1151
        %v1191 = vmul.f32 %v236, %v1155
        %v1192 = vmul.f32 %v237, %v1159
        %v1193 = vmul.f32 %v238, %v1163
        %v1194 = vmul.f32 %v239, %v1167
        %v1195 = vmul.f32 %v240, %v1171
        %s1196 = scalar_lea.vmem [#allocation6], 1
        %v1197 = vld [vmem:[%s1196] ss:$8 sm:$0xf]
        %v1198 = vld [vmem:[%s1196] ss:$8 sm:$0xf0]
        %v1199 = vor.u32 %v1197, %v1198
        %v1201 = vlaneseq
        %v1202 = vshrl.u32 %v1201, 7
        %v1203 = vsub.s32 0, %v1202
        %v1204 = vrot.slane %v1199, %v1203
        %v1205 = vlaneseq
        %v1206 = vshrl.u32 %v1205, 7
        %v1207 = vsub.s32 1, %v1206
        %v1208 = vrot.slane %v1199, %v1207
        %v1209 = vlaneseq
        %v1210 = vshrl.u32 %v1209, 7
        %v1211 = vsub.s32 2, %v1210
        %v1212 = vrot.slane %v1199, %v1211
        %v1213 = vlaneseq
        %v1214 = vshrl.u32 %v1213, 7
        %v1215 = vsub.s32 3, %v1214
        %v1216 = vrot.slane %v1199, %v1215
        %v1217 = vlaneseq
        %v1218 = vshrl.u32 %v1217, 7
        %v1219 = vsub.s32 4, %v1218
        %v1220 = vrot.slane %v1199, %v1219
        %v1221 = vlaneseq
        %v1222 = vshrl.u32 %v1221, 7
        %v1223 = vsub.s32 5, %v1222
        %v1224 = vrot.slane %v1199, %v1223
        %v1225 = vlaneseq
        %v1226 = vshrl.u32 %v1225, 7
        %v1227 = vsub.s32 6, %v1226
        %v1228 = vrot.slane %v1199, %v1227
        %v1229 = vlaneseq
        %v1230 = vshrl.u32 %v1229, 7
        %v1231 = vsub.s32 7, %v1230
        %v1232 = vrot.slane %v1199, %v1231
        %v1241 = vmul.f32 %v724, %v1204
        %v1242 = vmul.f32 %v725, %v1208
        %v1243 = vmul.f32 %v726, %v1212
        %v1244 = vmul.f32 %v727, %v1216
        %v1245 = vmul.f32 %v728, %v1220
        %v1246 = vmul.f32 %v729, %v1224
        %v1247 = vmul.f32 %v730, %v1228
        %v1248 = vmul.f32 %v731, %v1232
        %v1249 = vmul.f32 %v732, %v1204
        %v1250 = vmul.f32 %v733, %v1208
        %v1251 = vmul.f32 %v734, %v1212
        %v1252 = vmul.f32 %v735, %v1216
        %v1253 = vmul.f32 %v736, %v1220
        %v1254 = vmul.f32 %v737, %v1224
        %v1255 = vmul.f32 %v738, %v1228
        %v1256 = vmul.f32 %v739, %v1232
        %v1257 = vadd.f32 %v1180, %v1241
        %v1258 = vadd.f32 %v1181, %v1242
        %v1259 = vadd.f32 %v1182, %v1243
        %v1260 = vadd.f32 %v1183, %v1244
        %v1261 = vadd.f32 %v1184, %v1245
        %v1262 = vadd.f32 %v1185, %v1246
        %v1263 = vadd.f32 %v1186, %v1247
        %v1264 = vadd.f32 %v1187, %v1248
        %v1265 = vadd.f32 %v1188, %v1249
        %v1266 = vadd.f32 %v1189, %v1250
        %v1267 = vadd.f32 %v1190, %v1251
        %v1268 = vadd.f32 %v1191, %v1252
        %v1269 = vadd.f32 %v1192, %v1253
        %v1270 = vadd.f32 %v1193, %v1254
        %v1271 = vadd.f32 %v1194, %v1255
        %v1272 = vadd.f32 %v1195, %v1256
        %s1273 = scalar_lea.vmem [#allocation6], 6
        %v1274 = vld [vmem:[%s1273] ss:$8 sm:$0xf]
        %v1275 = vld [vmem:[%s1273] ss:$8 sm:$0xf0]
        %v1276 = vor.u32 %v1274, %v1275
        %v1278 = vlaneseq
        %v1279 = vshrl.u32 %v1278, 7
        %v1280 = vsub.s32 0, %v1279
        %v1281 = vrot.slane %v1276, %v1280
        %v1282 = vlaneseq
        %v1283 = vshrl.u32 %v1282, 7
        %v1284 = vsub.s32 1, %v1283
        %v1285 = vrot.slane %v1276, %v1284
        %v1286 = vlaneseq
        %v1287 = vshrl.u32 %v1286, 7
        %v1288 = vsub.s32 2, %v1287
        %v1289 = vrot.slane %v1276, %v1288
        %v1290 = vlaneseq
        %v1291 = vshrl.u32 %v1290, 7
        %v1292 = vsub.s32 3, %v1291
        %v1293 = vrot.slane %v1276, %v1292
        %v1294 = vlaneseq
        %v1295 = vshrl.u32 %v1294, 7
        %v1296 = vsub.s32 4, %v1295
        %v1297 = vrot.slane %v1276, %v1296
        %v1298 = vlaneseq
        %v1299 = vshrl.u32 %v1298, 7
        %v1300 = vsub.s32 5, %v1299
        %v1301 = vrot.slane %v1276, %v1300
        %v1302 = vlaneseq
        %v1303 = vshrl.u32 %v1302, 7
        %v1304 = vsub.s32 6, %v1303
        %v1305 = vrot.slane %v1276, %v1304
        %v1306 = vlaneseq
        %v1307 = vshrl.u32 %v1306, 7
        %v1308 = vsub.s32 7, %v1307
        %v1309 = vrot.slane %v1276, %v1308
        %v1318 = vmul.f32 %v816, %v1281
        %v1319 = vmul.f32 %v817, %v1285
        %v1320 = vmul.f32 %v818, %v1289
        %v1321 = vmul.f32 %v819, %v1293
        %v1322 = vmul.f32 %v820, %v1297
        %v1323 = vmul.f32 %v821, %v1301
        %v1324 = vmul.f32 %v822, %v1305
        %v1325 = vmul.f32 %v823, %v1309
        %v1326 = vmul.f32 %v824, %v1281
        %v1327 = vmul.f32 %v825, %v1285
        %v1328 = vmul.f32 %v826, %v1289
        %v1329 = vmul.f32 %v827, %v1293
        %v1330 = vmul.f32 %v828, %v1297
        %v1331 = vmul.f32 %v829, %v1301
        %v1332 = vmul.f32 %v830, %v1305
        %v1333 = vmul.f32 %v831, %v1309
        %v1334 = vadd.f32 %v1257, %v1318
        %v1335 = vadd.f32 %v1258, %v1319
        %v1336 = vadd.f32 %v1259, %v1320
        %v1337 = vadd.f32 %v1260, %v1321
        %v1338 = vadd.f32 %v1261, %v1322
        %v1339 = vadd.f32 %v1262, %v1323
        %v1340 = vadd.f32 %v1263, %v1324
        %v1341 = vadd.f32 %v1264, %v1325
        %v1342 = vadd.f32 %v1265, %v1326
        %v1343 = vadd.f32 %v1266, %v1327
        %v1344 = vadd.f32 %v1267, %v1328
        %v1345 = vadd.f32 %v1268, %v1329
        %v1346 = vadd.f32 %v1269, %v1330
        %v1347 = vadd.f32 %v1270, %v1331
        %v1348 = vadd.f32 %v1271, %v1332
        %v1349 = vadd.f32 %v1272, %v1333
        %s1350 = scalar_lea.vmem [#allocation6], 128
        %v1351 = vld [vmem:[%s1350] ss:$8 sm:$0xf]
        %v1352 = vld [vmem:[%s1350] ss:$8 sm:$0xf0]
        %v1353 = vor.u32 %v1351, %v1352
        %v1355 = vlaneseq
        %v1356 = vshrl.u32 %v1355, 7
        %v1357 = vsub.s32 0, %v1356
        %v1358 = vrot.slane %v1353, %v1357
        %v1359 = vlaneseq
        %v1360 = vshrl.u32 %v1359, 7
        %v1361 = vsub.s32 1, %v1360
        %v1362 = vrot.slane %v1353, %v1361
        %v1363 = vlaneseq
        %v1364 = vshrl.u32 %v1363, 7
        %v1365 = vsub.s32 2, %v1364
        %v1366 = vrot.slane %v1353, %v1365
        %v1367 = vlaneseq
        %v1368 = vshrl.u32 %v1367, 7
        %v1369 = vsub.s32 3, %v1368
        %v1370 = vrot.slane %v1353, %v1369
        %v1371 = vlaneseq
        %v1372 = vshrl.u32 %v1371, 7
        %v1373 = vsub.s32 4, %v1372
        %v1374 = vrot.slane %v1353, %v1373
        %v1375 = vlaneseq
        %v1376 = vshrl.u32 %v1375, 7
        %v1377 = vsub.s32 5, %v1376
        %v1378 = vrot.slane %v1353, %v1377
        %v1379 = vlaneseq
        %v1380 = vshrl.u32 %v1379, 7
        %v1381 = vsub.s32 6, %v1380
        %v1382 = vrot.slane %v1353, %v1381
        %v1383 = vlaneseq
        %v1384 = vshrl.u32 %v1383, 7
        %v1385 = vsub.s32 7, %v1384
        %v1386 = vrot.slane %v1353, %v1385
        %v1395 = vmul.f32 %v909, %v1358
        %v1396 = vmul.f32 %v910, %v1362
        %v1397 = vmul.f32 %v911, %v1366
        %v1398 = vmul.f32 %v912, %v1370
        %v1399 = vmul.f32 %v913, %v1374
        %v1400 = vmul.f32 %v914, %v1378
        %v1401 = vmul.f32 %v915, %v1382
        %v1402 = vmul.f32 %v916, %v1386
        %v1403 = vmul.f32 %v917, %v1358
        %v1404 = vmul.f32 %v918, %v1362
        %v1405 = vmul.f32 %v919, %v1366
        %v1406 = vmul.f32 %v920, %v1370
        %v1407 = vmul.f32 %v921, %v1374
        %v1408 = vmul.f32 %v922, %v1378
        %v1409 = vmul.f32 %v923, %v1382
        %v1410 = vmul.f32 %v924, %v1386
        %v1411 = vadd.f32 %v1334, %v1395
        %v1412 = vadd.f32 %v1335, %v1396
        %v1413 = vadd.f32 %v1336, %v1397
        %v1414 = vadd.f32 %v1337, %v1398
        %v1415 = vadd.f32 %v1338, %v1399
        %v1416 = vadd.f32 %v1339, %v1400
        %v1417 = vadd.f32 %v1340, %v1401
        %v1418 = vadd.f32 %v1341, %v1402
        %v1419 = vadd.f32 %v1342, %v1403
        %v1420 = vadd.f32 %v1343, %v1404
        %v1421 = vadd.f32 %v1344, %v1405
        %v1422 = vadd.f32 %v1345, %v1406
        %v1423 = vadd.f32 %v1346, %v1407
        %v1424 = vadd.f32 %v1347, %v1408
        %v1425 = vadd.f32 %v1348, %v1409
        %v1426 = vadd.f32 %v1349, %v1410
        %s1427 = scalar_lea.vmem [#allocation6], 133
        %v1428 = vld [vmem:[%s1427] ss:$8 sm:$0xf]
        %v1429 = vld [vmem:[%s1427] ss:$8 sm:$0xf0]
        %v1430 = vor.u32 %v1428, %v1429
        %v1432 = vlaneseq
        %v1433 = vshrl.u32 %v1432, 7
        %v1434 = vsub.s32 0, %v1433
        %v1435 = vrot.slane %v1430, %v1434
        %v1436 = vlaneseq
        %v1437 = vshrl.u32 %v1436, 7
        %v1438 = vsub.s32 1, %v1437
        %v1439 = vrot.slane %v1430, %v1438
        %v1440 = vlaneseq
        %v1441 = vshrl.u32 %v1440, 7
        %v1442 = vsub.s32 2, %v1441
        %v1443 = vrot.slane %v1430, %v1442
        %v1444 = vlaneseq
        %v1445 = vshrl.u32 %v1444, 7
        %v1446 = vsub.s32 3, %v1445
        %v1447 = vrot.slane %v1430, %v1446
        %v1448 = vlaneseq
        %v1449 = vshrl.u32 %v1448, 7
        %v1450 = vsub.s32 4, %v1449
        %v1451 = vrot.slane %v1430, %v1450
        %v1452 = vlaneseq
        %v1453 = vshrl.u32 %v1452, 7
        %v1454 = vsub.s32 5, %v1453
        %v1455 = vrot.slane %v1430, %v1454
        %v1456 = vlaneseq
        %v1457 = vshrl.u32 %v1456, 7
        %v1458 = vsub.s32 6, %v1457
        %v1459 = vrot.slane %v1430, %v1458
        %v1460 = vlaneseq
        %v1461 = vshrl.u32 %v1460, 7
        %v1462 = vsub.s32 7, %v1461
        %v1463 = vrot.slane %v1430, %v1462
        %v1472 = vmul.f32 %v1002, %v1435
        %v1473 = vmul.f32 %v1003, %v1439
        %v1474 = vmul.f32 %v1004, %v1443
        %v1475 = vmul.f32 %v1005, %v1447
        %v1476 = vmul.f32 %v1006, %v1451
        %v1477 = vmul.f32 %v1007, %v1455
        %v1478 = vmul.f32 %v1008, %v1459
        %v1479 = vmul.f32 %v1009, %v1463
        %v1480 = vmul.f32 %v1010, %v1435
        %v1481 = vmul.f32 %v1011, %v1439
        %v1482 = vmul.f32 %v1012, %v1443
        %v1483 = vmul.f32 %v1013, %v1447
        %v1484 = vmul.f32 %v1014, %v1451
        %v1485 = vmul.f32 %v1015, %v1455
        %v1486 = vmul.f32 %v1016, %v1459
        %v1487 = vmul.f32 %v1017, %v1463
        %v1488 = vadd.f32 %v1411, %v1472
        %v1489 = vadd.f32 %v1412, %v1473
        %v1490 = vadd.f32 %v1413, %v1474
        %v1491 = vadd.f32 %v1414, %v1475
        %v1492 = vadd.f32 %v1415, %v1476
        %v1493 = vadd.f32 %v1416, %v1477
        %v1494 = vadd.f32 %v1417, %v1478
        %v1495 = vadd.f32 %v1418, %v1479
        %v1496 = vadd.f32 %v1419, %v1480
        %v1497 = vadd.f32 %v1420, %v1481
        %v1498 = vadd.f32 %v1421, %v1482
        %v1499 = vadd.f32 %v1422, %v1483
        %v1500 = vadd.f32 %v1423, %v1484
        %v1501 = vadd.f32 %v1424, %v1485
        %v1502 = vadd.f32 %v1425, %v1486
        %v1503 = vadd.f32 %v1426, %v1487
        %1504 = vrot.lane.b32.xlu0 %v1488, 64
        %v1505 = vpop.permute.xlu0 %1504
        %1506 = vrot.lane.b32.xlu0 %v1496, 64
        %v1507 = vpop.permute.xlu0 %1506
        %1508 = vrot.lane.b32.xlu0 %v1489, 64
        %v1509 = vpop.permute.xlu0 %1508
        %1510 = vrot.lane.b32.xlu0 %v1497, 64
        %v1511 = vpop.permute.xlu0 %1510
        %1512 = vrot.lane.b32.xlu0 %v1490, 64
        %v1513 = vpop.permute.xlu0 %1512
        %1514 = vrot.lane.b32.xlu0 %v1498, 64
        %v1515 = vpop.permute.xlu0 %1514
        %1516 = vrot.lane.b32.xlu0 %v1491, 64
        %v1517 = vpop.permute.xlu0 %1516
        %1518 = vrot.lane.b32.xlu0 %v1499, 64
        %v1519 = vpop.permute.xlu0 %1518
        %1520 = vrot.lane.b32.xlu0 %v1492, 64
        %v1521 = vpop.permute.xlu0 %1520
        %1522 = vrot.lane.b32.xlu0 %v1500, 64
        %v1523 = vpop.permute.xlu0 %1522
        %1524 = vrot.lane.b32.xlu0 %v1493, 64
        %v1525 = vpop.permute.xlu0 %1524
        %1526 = vrot.lane.b32.xlu0 %v1501, 64
        %v1527 = vpop.permute.xlu0 %1526
        %1528 = vrot.lane.b32.xlu0 %v1494, 64
        %v1529 = vpop.permute.xlu0 %1528
        %1530 = vrot.lane.b32.xlu0 %v1502, 64
        %v1531 = vpop.permute.xlu0 %1530
        %1532 = vrot.lane.b32.xlu0 %v1495, 64
        %v1533 = vpop.permute.xlu0 %1532
        %1534 = vrot.lane.b32.xlu0 %v1503, 64
        %v1535 = vpop.permute.xlu0 %1534
        %vm1536 = vcmp.lt.s32.totalorder %v217, 64
        %v1537 = vsel %vm1536, %v1529, %v1533
        %v1538 = vsel %vm1536, %v1531, %v1535
        %v1539 = vsel %vm1536, %v1525, %v1529
        %v1540 = vsel %vm1536, %v1527, %v1531
        %v1541 = vsel %vm1536, %v1521, %v1525
        %v1542 = vsel %vm1536, %v1523, %v1527
        %v1543 = vsel %vm1536, %v1517, %v1521
        %v1544 = vsel %vm1536, %v1519, %v1523
        %v1545 = vsel %vm1536, %v1513, %v1517
        %v1546 = vsel %vm1536, %v1515, %v1519
        %v1547 = vsel %vm1536, %v1509, %v1513
        %v1548 = vsel %vm1536, %v1511, %v1515
        %v1549 = vsel %vm1536, %v1505, %v1509
        %v1550 = vsel %vm1536, %v1507, %v1511
        %v1551 = vsel %vm1536, %v1533, %v1505
        %v1552 = vsel %vm1536, %v1535, %v1507
        %vm1553 = vcmp.ge.s32.totalorder %v217, 64
        %vm1554 = vcmp.ge.s32.totalorder %v218, 64
        %vm1555 = vcmp.ge.s32.totalorder %v219, 64
        %vm1556 = vcmp.ge.s32.totalorder %v220, 64
        %vm1557 = vcmp.ge.s32.totalorder %v221, 64
        %vm1558 = vcmp.ge.s32.totalorder %v222, 64
        %vm1559 = vcmp.ge.s32.totalorder %v223, 64
        %vm1560 = vcmp.ge.s32.totalorder %v224, 64
        %v1561 = vsel %vm1553, %v1551, 0.0
        %v1562 = vsel %vm1554, %v1549, 0.0
        %v1563 = vsel %vm1555, %v1547, 0.0
        %v1564 = vsel %vm1556, %v1545, 0.0
        %v1565 = vsel %vm1557, %v1543, 0.0
        %v1566 = vsel %vm1558, %v1541, 0.0
        %v1567 = vsel %vm1559, %v1539, 0.0
        %v1568 = vsel %vm1560, %v1537, 0.0
        %v1569 = vsel %vm1553, %v1552, 0.0
        %v1570 = vsel %vm1554, %v1550, 0.0
        %v1571 = vsel %vm1555, %v1548, 0.0
        %v1572 = vsel %vm1556, %v1546, 0.0
        %v1573 = vsel %vm1557, %v1544, 0.0
        %v1574 = vsel %vm1558, %v1542, 0.0
        %v1575 = vsel %vm1559, %v1540, 0.0
        %v1576 = vsel %vm1560, %v1538, 0.0
        %v1577 = vadd.f32 %v1119, %v1561
        %v1578 = vadd.f32 %v1120, %v1562
        %v1579 = vadd.f32 %v1121, %v1563
        %v1580 = vadd.f32 %v1122, %v1564
        %v1581 = vadd.f32 %v1123, %v1565
        %v1582 = vadd.f32 %v1124, %v1566
        %v1583 = vadd.f32 %v1125, %v1567
        %v1584 = vadd.f32 %v1126, %v1568
        %v1585 = vadd.f32 %v1127, %v1569
        %v1586 = vadd.f32 %v1128, %v1570
        %v1587 = vadd.f32 %v1129, %v1571
        %v1588 = vadd.f32 %v1130, %v1572
        %v1589 = vadd.f32 %v1131, %v1573
        %v1590 = vadd.f32 %v1132, %v1574
        %v1591 = vadd.f32 %v1133, %v1575
        %v1592 = vadd.f32 %v1134, %v1576
        %s1593 = scalar_lea.vmem [#allocation6], 68
        %v1594 = vld [vmem:[%s1593] ss:$8 sm:$0xf]
        %v1595 = vld [vmem:[%s1593] ss:$8 sm:$0xf0]
        %v1596 = vor.u32 %v1594, %v1595
        %v1598 = vlaneseq
        %v1599 = vshrl.u32 %v1598, 7
        %v1600 = vsub.s32 0, %v1599
        %v1601 = vrot.slane %v1596, %v1600
        %v1602 = vlaneseq
        %v1603 = vshrl.u32 %v1602, 7
        %v1604 = vsub.s32 1, %v1603
        %v1605 = vrot.slane %v1596, %v1604
        %v1606 = vlaneseq
        %v1607 = vshrl.u32 %v1606, 7
        %v1608 = vsub.s32 2, %v1607
        %v1609 = vrot.slane %v1596, %v1608
        %v1610 = vlaneseq
        %v1611 = vshrl.u32 %v1610, 7
        %v1612 = vsub.s32 3, %v1611
        %v1613 = vrot.slane %v1596, %v1612
        %v1614 = vlaneseq
        %v1615 = vshrl.u32 %v1614, 7
        %v1616 = vsub.s32 4, %v1615
        %v1617 = vrot.slane %v1596, %v1616
        %v1618 = vlaneseq
        %v1619 = vshrl.u32 %v1618, 7
        %v1620 = vsub.s32 5, %v1619
        %v1621 = vrot.slane %v1596, %v1620
        %v1622 = vlaneseq
        %v1623 = vshrl.u32 %v1622, 7
        %v1624 = vsub.s32 6, %v1623
        %v1625 = vrot.slane %v1596, %v1624
        %v1626 = vlaneseq
        %v1627 = vshrl.u32 %v1626, 7
        %v1628 = vsub.s32 7, %v1627
        %v1629 = vrot.slane %v1596, %v1628
        %v1638 = vmul.f32 %v225, %v1601
        %v1639 = vmul.f32 %v226, %v1605
        %v1640 = vmul.f32 %v227, %v1609
        %v1641 = vmul.f32 %v228, %v1613
        %v1642 = vmul.f32 %v229, %v1617
        %v1643 = vmul.f32 %v230, %v1621
        %v1644 = vmul.f32 %v231, %v1625
        %v1645 = vmul.f32 %v232, %v1629
        %v1646 = vmul.f32 %v233, %v1601
        %v1647 = vmul.f32 %v234, %v1605
        %v1648 = vmul.f32 %v235, %v1609
        %v1649 = vmul.f32 %v236, %v1613
        %v1650 = vmul.f32 %v237, %v1617
        %v1651 = vmul.f32 %v238, %v1621
        %v1652 = vmul.f32 %v239, %v1625
        %v1653 = vmul.f32 %v240, %v1629
        %s1654 = scalar_lea.vmem [#allocation6], 2
        %v1655 = vld [vmem:[%s1654] ss:$8 sm:$0xf]
        %v1656 = vld [vmem:[%s1654] ss:$8 sm:$0xf0]
        %v1657 = vor.u32 %v1655, %v1656
        %v1659 = vlaneseq
        %v1660 = vshrl.u32 %v1659, 7
        %v1661 = vsub.s32 0, %v1660
        %v1662 = vrot.slane %v1657, %v1661
        %v1663 = vlaneseq
        %v1664 = vshrl.u32 %v1663, 7
        %v1665 = vsub.s32 1, %v1664
        %v1666 = vrot.slane %v1657, %v1665
        %v1667 = vlaneseq
        %v1668 = vshrl.u32 %v1667, 7
        %v1669 = vsub.s32 2, %v1668
        %v1670 = vrot.slane %v1657, %v1669
        %v1671 = vlaneseq
        %v1672 = vshrl.u32 %v1671, 7
        %v1673 = vsub.s32 3, %v1672
        %v1674 = vrot.slane %v1657, %v1673
        %v1675 = vlaneseq
        %v1676 = vshrl.u32 %v1675, 7
        %v1677 = vsub.s32 4, %v1676
        %v1678 = vrot.slane %v1657, %v1677
        %v1679 = vlaneseq
        %v1680 = vshrl.u32 %v1679, 7
        %v1681 = vsub.s32 5, %v1680
        %v1682 = vrot.slane %v1657, %v1681
        %v1683 = vlaneseq
        %v1684 = vshrl.u32 %v1683, 7
        %v1685 = vsub.s32 6, %v1684
        %v1686 = vrot.slane %v1657, %v1685
        %v1687 = vlaneseq
        %v1688 = vshrl.u32 %v1687, 7
        %v1689 = vsub.s32 7, %v1688
        %v1690 = vrot.slane %v1657, %v1689
        %v1699 = vmul.f32 %v724, %v1662
        %v1700 = vmul.f32 %v725, %v1666
        %v1701 = vmul.f32 %v726, %v1670
        %v1702 = vmul.f32 %v727, %v1674
        %v1703 = vmul.f32 %v728, %v1678
        %v1704 = vmul.f32 %v729, %v1682
        %v1705 = vmul.f32 %v730, %v1686
        %v1706 = vmul.f32 %v731, %v1690
        %v1707 = vmul.f32 %v732, %v1662
        %v1708 = vmul.f32 %v733, %v1666
        %v1709 = vmul.f32 %v734, %v1670
        %v1710 = vmul.f32 %v735, %v1674
        %v1711 = vmul.f32 %v736, %v1678
        %v1712 = vmul.f32 %v737, %v1682
        %v1713 = vmul.f32 %v738, %v1686
        %v1714 = vmul.f32 %v739, %v1690
        %v1715 = vadd.f32 %v1638, %v1699
        %v1716 = vadd.f32 %v1639, %v1700
        %v1717 = vadd.f32 %v1640, %v1701
        %v1718 = vadd.f32 %v1641, %v1702
        %v1719 = vadd.f32 %v1642, %v1703
        %v1720 = vadd.f32 %v1643, %v1704
        %v1721 = vadd.f32 %v1644, %v1705
        %v1722 = vadd.f32 %v1645, %v1706
        %v1723 = vadd.f32 %v1646, %v1707
        %v1724 = vadd.f32 %v1647, %v1708
        %v1725 = vadd.f32 %v1648, %v1709
        %v1726 = vadd.f32 %v1649, %v1710
        %v1727 = vadd.f32 %v1650, %v1711
        %v1728 = vadd.f32 %v1651, %v1712
        %v1729 = vadd.f32 %v1652, %v1713
        %v1730 = vadd.f32 %v1653, %v1714
        %s1731 = scalar_lea.vmem [#allocation6], 7
        %v1732 = vld [vmem:[%s1731] ss:$8 sm:$0xf]
        %v1733 = vld [vmem:[%s1731] ss:$8 sm:$0xf0]
        %v1734 = vor.u32 %v1732, %v1733
        %v1736 = vlaneseq
        %v1737 = vshrl.u32 %v1736, 7
        %v1738 = vsub.s32 0, %v1737
        %v1739 = vrot.slane %v1734, %v1738
        %v1740 = vlaneseq
        %v1741 = vshrl.u32 %v1740, 7
        %v1742 = vsub.s32 1, %v1741
        %v1743 = vrot.slane %v1734, %v1742
        %v1744 = vlaneseq
        %v1745 = vshrl.u32 %v1744, 7
        %v1746 = vsub.s32 2, %v1745
        %v1747 = vrot.slane %v1734, %v1746
        %v1748 = vlaneseq
        %v1749 = vshrl.u32 %v1748, 7
        %v1750 = vsub.s32 3, %v1749
        %v1751 = vrot.slane %v1734, %v1750
        %v1752 = vlaneseq
        %v1753 = vshrl.u32 %v1752, 7
        %v1754 = vsub.s32 4, %v1753
        %v1755 = vrot.slane %v1734, %v1754
        %v1756 = vlaneseq
        %v1757 = vshrl.u32 %v1756, 7
        %v1758 = vsub.s32 5, %v1757
        %v1759 = vrot.slane %v1734, %v1758
        %v1760 = vlaneseq
        %v1761 = vshrl.u32 %v1760, 7
        %v1762 = vsub.s32 6, %v1761
        %v1763 = vrot.slane %v1734, %v1762
        %v1764 = vlaneseq
        %v1765 = vshrl.u32 %v1764, 7
        %v1766 = vsub.s32 7, %v1765
        %v1767 = vrot.slane %v1734, %v1766
        %v1776 = vmul.f32 %v816, %v1739
        %v1777 = vmul.f32 %v817, %v1743
        %v1778 = vmul.f32 %v818, %v1747
        %v1779 = vmul.f32 %v819, %v1751
        %v1780 = vmul.f32 %v820, %v1755
        %v1781 = vmul.f32 %v821, %v1759
        %v1782 = vmul.f32 %v822, %v1763
        %v1783 = vmul.f32 %v823, %v1767
        %v1784 = vmul.f32 %v824, %v1739
        %v1785 = vmul.f32 %v825, %v1743
        %v1786 = vmul.f32 %v826, %v1747
        %v1787 = vmul.f32 %v827, %v1751
        %v1788 = vmul.f32 %v828, %v1755
        %v1789 = vmul.f32 %v829, %v1759
        %v1790 = vmul.f32 %v830, %v1763
        %v1791 = vmul.f32 %v831, %v1767
        %v1792 = vadd.f32 %v1715, %v1776
        %v1793 = vadd.f32 %v1716, %v1777
        %v1794 = vadd.f32 %v1717, %v1778
        %v1795 = vadd.f32 %v1718, %v1779
        %v1796 = vadd.f32 %v1719, %v1780
        %v1797 = vadd.f32 %v1720, %v1781
        %v1798 = vadd.f32 %v1721, %v1782
        %v1799 = vadd.f32 %v1722, %v1783
        %v1800 = vadd.f32 %v1723, %v1784
        %v1801 = vadd.f32 %v1724, %v1785
        %v1802 = vadd.f32 %v1725, %v1786
        %v1803 = vadd.f32 %v1726, %v1787
        %v1804 = vadd.f32 %v1727, %v1788
        %v1805 = vadd.f32 %v1728, %v1789
        %v1806 = vadd.f32 %v1729, %v1790
        %v1807 = vadd.f32 %v1730, %v1791
        %s1808 = scalar_lea.vmem [#allocation6], 129
        %v1809 = vld [vmem:[%s1808] ss:$8 sm:$0xf]
        %v1810 = vld [vmem:[%s1808] ss:$8 sm:$0xf0]
        %v1811 = vor.u32 %v1809, %v1810
        %v1813 = vlaneseq
        %v1814 = vshrl.u32 %v1813, 7
        %v1815 = vsub.s32 0, %v1814
        %v1816 = vrot.slane %v1811, %v1815
        %v1817 = vlaneseq
        %v1818 = vshrl.u32 %v1817, 7
        %v1819 = vsub.s32 1, %v1818
        %v1820 = vrot.slane %v1811, %v1819
        %v1821 = vlaneseq
        %v1822 = vshrl.u32 %v1821, 7
        %v1823 = vsub.s32 2, %v1822
        %v1824 = vrot.slane %v1811, %v1823
        %v1825 = vlaneseq
        %v1826 = vshrl.u32 %v1825, 7
        %v1827 = vsub.s32 3, %v1826
        %v1828 = vrot.slane %v1811, %v1827
        %v1829 = vlaneseq
        %v1830 = vshrl.u32 %v1829, 7
        %v1831 = vsub.s32 4, %v1830
        %v1832 = vrot.slane %v1811, %v1831
        %v1833 = vlaneseq
        %v1834 = vshrl.u32 %v1833, 7
        %v1835 = vsub.s32 5, %v1834
        %v1836 = vrot.slane %v1811, %v1835
        %v1837 = vlaneseq
        %v1838 = vshrl.u32 %v1837, 7
        %v1839 = vsub.s32 6, %v1838
        %v1840 = vrot.slane %v1811, %v1839
        %v1841 = vlaneseq
        %v1842 = vshrl.u32 %v1841, 7
        %v1843 = vsub.s32 7, %v1842
        %v1844 = vrot.slane %v1811, %v1843
        %v1853 = vmul.f32 %v909, %v1816
        %v1854 = vmul.f32 %v910, %v1820
        %v1855 = vmul.f32 %v911, %v1824
        %v1856 = vmul.f32 %v912, %v1828
        %v1857 = vmul.f32 %v913, %v1832
        %v1858 = vmul.f32 %v914, %v1836
        %v1859 = vmul.f32 %v915, %v1840
        %v1860 = vmul.f32 %v916, %v1844
        %v1861 = vmul.f32 %v917, %v1816
        %v1862 = vmul.f32 %v918, %v1820
        %v1863 = vmul.f32 %v919, %v1824
        %v1864 = vmul.f32 %v920, %v1828
        %v1865 = vmul.f32 %v921, %v1832
        %v1866 = vmul.f32 %v922, %v1836
        %v1867 = vmul.f32 %v923, %v1840
        %v1868 = vmul.f32 %v924, %v1844
        %v1869 = vadd.f32 %v1792, %v1853
        %v1870 = vadd.f32 %v1793, %v1854
        %v1871 = vadd.f32 %v1794, %v1855
        %v1872 = vadd.f32 %v1795, %v1856
        %v1873 = vadd.f32 %v1796, %v1857
        %v1874 = vadd.f32 %v1797, %v1858
        %v1875 = vadd.f32 %v1798, %v1859
        %v1876 = vadd.f32 %v1799, %v1860
        %v1877 = vadd.f32 %v1800, %v1861
        %v1878 = vadd.f32 %v1801, %v1862
        %v1879 = vadd.f32 %v1802, %v1863
        %v1880 = vadd.f32 %v1803, %v1864
        %v1881 = vadd.f32 %v1804, %v1865
        %v1882 = vadd.f32 %v1805, %v1866
        %v1883 = vadd.f32 %v1806, %v1867
        %v1884 = vadd.f32 %v1807, %v1868
        %s1885 = scalar_lea.vmem [#allocation6], 134
        %v1886 = vld [vmem:[%s1885] ss:$8 sm:$0xf]
        %v1887 = vld [vmem:[%s1885] ss:$8 sm:$0xf0]
        %v1888 = vor.u32 %v1886, %v1887
        %v1890 = vlaneseq
        %v1891 = vshrl.u32 %v1890, 7
        %v1892 = vsub.s32 0, %v1891
        %v1893 = vrot.slane %v1888, %v1892
        %v1894 = vlaneseq
        %v1895 = vshrl.u32 %v1894, 7
        %v1896 = vsub.s32 1, %v1895
        %v1897 = vrot.slane %v1888, %v1896
        %v1898 = vlaneseq
        %v1899 = vshrl.u32 %v1898, 7
        %v1900 = vsub.s32 2, %v1899
        %v1901 = vrot.slane %v1888, %v1900
        %v1902 = vlaneseq
        %v1903 = vshrl.u32 %v1902, 7
        %v1904 = vsub.s32 3, %v1903
        %v1905 = vrot.slane %v1888, %v1904
        %v1906 = vlaneseq
        %v1907 = vshrl.u32 %v1906, 7
        %v1908 = vsub.s32 4, %v1907
        %v1909 = vrot.slane %v1888, %v1908
        %v1910 = vlaneseq
        %v1911 = vshrl.u32 %v1910, 7
        %v1912 = vsub.s32 5, %v1911
        %v1913 = vrot.slane %v1888, %v1912
        %v1914 = vlaneseq
        %v1915 = vshrl.u32 %v1914, 7
        %v1916 = vsub.s32 6, %v1915
        %v1917 = vrot.slane %v1888, %v1916
        %v1918 = vlaneseq
        %v1919 = vshrl.u32 %v1918, 7
        %v1920 = vsub.s32 7, %v1919
        %v1921 = vrot.slane %v1888, %v1920
        %v1930 = vmul.f32 %v1002, %v1893
        %v1931 = vmul.f32 %v1003, %v1897
        %v1932 = vmul.f32 %v1004, %v1901
        %v1933 = vmul.f32 %v1005, %v1905
        %v1934 = vmul.f32 %v1006, %v1909
        %v1935 = vmul.f32 %v1007, %v1913
        %v1936 = vmul.f32 %v1008, %v1917
        %v1937 = vmul.f32 %v1009, %v1921
        %v1938 = vmul.f32 %v1010, %v1893
        %v1939 = vmul.f32 %v1011, %v1897
        %v1940 = vmul.f32 %v1012, %v1901
        %v1941 = vmul.f32 %v1013, %v1905
        %v1942 = vmul.f32 %v1014, %v1909
        %v1943 = vmul.f32 %v1015, %v1913
        %v1944 = vmul.f32 %v1016, %v1917
        %v1945 = vmul.f32 %v1017, %v1921
        %v1946 = vadd.f32 %v1869, %v1930
        %v1947 = vadd.f32 %v1870, %v1931
        %v1948 = vadd.f32 %v1871, %v1932
        %v1949 = vadd.f32 %v1872, %v1933
        %v1950 = vadd.f32 %v1873, %v1934
        %v1951 = vadd.f32 %v1874, %v1935
        %v1952 = vadd.f32 %v1875, %v1936
        %v1953 = vadd.f32 %v1876, %v1937
        %v1954 = vadd.f32 %v1877, %v1938
        %v1955 = vadd.f32 %v1878, %v1939
        %v1956 = vadd.f32 %v1879, %v1940
        %v1957 = vadd.f32 %v1880, %v1941
        %v1958 = vadd.f32 %v1881, %v1942
        %v1959 = vadd.f32 %v1882, %v1943
        %v1960 = vadd.f32 %v1883, %v1944
        %v1961 = vadd.f32 %v1884, %v1945
        %v1962 = vadd.f32 %v1577, %v1946
        %v1963 = vadd.f32 %v1578, %v1947
        %v1964 = vadd.f32 %v1579, %v1948
        %v1965 = vadd.f32 %v1580, %v1949
        %v1966 = vadd.f32 %v1581, %v1950
        %v1967 = vadd.f32 %v1582, %v1951
        %v1968 = vadd.f32 %v1583, %v1952
        %v1969 = vadd.f32 %v1584, %v1953
        %v1970 = vadd.f32 %v1585, %v1954
        %v1971 = vadd.f32 %v1586, %v1955
        %v1972 = vadd.f32 %v1587, %v1956
        %v1973 = vadd.f32 %v1588, %v1957
        %v1974 = vadd.f32 %v1589, %v1958
        %v1975 = vadd.f32 %v1590, %v1959
        %v1976 = vadd.f32 %v1591, %v1960
        %v1977 = vadd.f32 %v1592, %v1961
        %s1978 = scalar_lea.vmem [#allocation6], 69
        %v1979 = vld [vmem:[%s1978] ss:$8 sm:$0xf]
        %v1980 = vld [vmem:[%s1978] ss:$8 sm:$0xf0]
        %v1981 = vor.u32 %v1979, %v1980
        %v1983 = vlaneseq
        %v1984 = vshrl.u32 %v1983, 7
        %v1985 = vsub.s32 0, %v1984
        %v1986 = vrot.slane %v1981, %v1985
        %v1987 = vlaneseq
        %v1988 = vshrl.u32 %v1987, 7
        %v1989 = vsub.s32 1, %v1988
        %v1990 = vrot.slane %v1981, %v1989
        %v1991 = vlaneseq
        %v1992 = vshrl.u32 %v1991, 7
        %v1993 = vsub.s32 2, %v1992
        %v1994 = vrot.slane %v1981, %v1993
        %v1995 = vlaneseq
        %v1996 = vshrl.u32 %v1995, 7
        %v1997 = vsub.s32 3, %v1996
        %v1998 = vrot.slane %v1981, %v1997
        %v1999 = vlaneseq
        %v2000 = vshrl.u32 %v1999, 7
        %v2001 = vsub.s32 4, %v2000
        %v2002 = vrot.slane %v1981, %v2001
        %v2003 = vlaneseq
        %v2004 = vshrl.u32 %v2003, 7
        %v2005 = vsub.s32 5, %v2004
        %v2006 = vrot.slane %v1981, %v2005
        %v2007 = vlaneseq
        %v2008 = vshrl.u32 %v2007, 7
        %v2009 = vsub.s32 6, %v2008
        %v2010 = vrot.slane %v1981, %v2009
        %v2011 = vlaneseq
        %v2012 = vshrl.u32 %v2011, 7
        %v2013 = vsub.s32 7, %v2012
        %v2014 = vrot.slane %v1981, %v2013
        %v2023 = vmul.f32 %v225, %v1986
        %v2024 = vmul.f32 %v226, %v1990
        %v2025 = vmul.f32 %v227, %v1994
        %v2026 = vmul.f32 %v228, %v1998
        %v2027 = vmul.f32 %v229, %v2002
        %v2028 = vmul.f32 %v230, %v2006
        %v2029 = vmul.f32 %v231, %v2010
        %v2030 = vmul.f32 %v232, %v2014
        %v2031 = vmul.f32 %v233, %v1986
        %v2032 = vmul.f32 %v234, %v1990
        %v2033 = vmul.f32 %v235, %v1994
        %v2034 = vmul.f32 %v236, %v1998
        %v2035 = vmul.f32 %v237, %v2002
        %v2036 = vmul.f32 %v238, %v2006
        %v2037 = vmul.f32 %v239, %v2010
        %v2038 = vmul.f32 %v240, %v2014
        %s2039 = scalar_lea.vmem [#allocation6], 3
        %v2040 = vld [vmem:[%s2039] ss:$8 sm:$0xf]
        %v2041 = vld [vmem:[%s2039] ss:$8 sm:$0xf0]
        %v2042 = vor.u32 %v2040, %v2041
        %v2044 = vlaneseq
        %v2045 = vshrl.u32 %v2044, 7
        %v2046 = vsub.s32 0, %v2045
        %v2047 = vrot.slane %v2042, %v2046
        %v2048 = vlaneseq
        %v2049 = vshrl.u32 %v2048, 7
        %v2050 = vsub.s32 1, %v2049
        %v2051 = vrot.slane %v2042, %v2050
        %v2052 = vlaneseq
        %v2053 = vshrl.u32 %v2052, 7
        %v2054 = vsub.s32 2, %v2053
        %v2055 = vrot.slane %v2042, %v2054
        %v2056 = vlaneseq
        %v2057 = vshrl.u32 %v2056, 7
        %v2058 = vsub.s32 3, %v2057
        %v2059 = vrot.slane %v2042, %v2058
        %v2060 = vlaneseq
        %v2061 = vshrl.u32 %v2060, 7
        %v2062 = vsub.s32 4, %v2061
        %v2063 = vrot.slane %v2042, %v2062
        %v2064 = vlaneseq
        %v2065 = vshrl.u32 %v2064, 7
        %v2066 = vsub.s32 5, %v2065
        %v2067 = vrot.slane %v2042, %v2066
        %v2068 = vlaneseq
        %v2069 = vshrl.u32 %v2068, 7
        %v2070 = vsub.s32 6, %v2069
        %v2071 = vrot.slane %v2042, %v2070
        %v2072 = vlaneseq
        %v2073 = vshrl.u32 %v2072, 7
        %v2074 = vsub.s32 7, %v2073
        %v2075 = vrot.slane %v2042, %v2074
        %v2084 = vmul.f32 %v724, %v2047
        %v2085 = vmul.f32 %v725, %v2051
        %v2086 = vmul.f32 %v726, %v2055
        %v2087 = vmul.f32 %v727, %v2059
        %v2088 = vmul.f32 %v728, %v2063
        %v2089 = vmul.f32 %v729, %v2067
        %v2090 = vmul.f32 %v730, %v2071
        %v2091 = vmul.f32 %v731, %v2075
        %v2092 = vmul.f32 %v732, %v2047
        %v2093 = vmul.f32 %v733, %v2051
        %v2094 = vmul.f32 %v734, %v2055
        %v2095 = vmul.f32 %v735, %v2059
        %v2096 = vmul.f32 %v736, %v2063
        %v2097 = vmul.f32 %v737, %v2067
        %v2098 = vmul.f32 %v738, %v2071
        %v2099 = vmul.f32 %v739, %v2075
        %v2100 = vadd.f32 %v2023, %v2084
        %v2101 = vadd.f32 %v2024, %v2085
        %v2102 = vadd.f32 %v2025, %v2086
        %v2103 = vadd.f32 %v2026, %v2087
        %v2104 = vadd.f32 %v2027, %v2088
        %v2105 = vadd.f32 %v2028, %v2089
        %v2106 = vadd.f32 %v2029, %v2090
        %v2107 = vadd.f32 %v2030, %v2091
        %v2108 = vadd.f32 %v2031, %v2092
        %v2109 = vadd.f32 %v2032, %v2093
        %v2110 = vadd.f32 %v2033, %v2094
        %v2111 = vadd.f32 %v2034, %v2095
        %v2112 = vadd.f32 %v2035, %v2096
        %v2113 = vadd.f32 %v2036, %v2097
        %v2114 = vadd.f32 %v2037, %v2098
        %v2115 = vadd.f32 %v2038, %v2099
        %s2116 = scalar_lea.vmem [#allocation6], 64
        %v2117 = vld [vmem:[%s2116] ss:$8 sm:$0xf]
        %v2118 = vld [vmem:[%s2116] ss:$8 sm:$0xf0]
        %v2119 = vor.u32 %v2117, %v2118
        %v2121 = vlaneseq
        %v2122 = vshrl.u32 %v2121, 7
        %v2123 = vsub.s32 0, %v2122
        %v2124 = vrot.slane %v2119, %v2123
        %v2125 = vlaneseq
        %v2126 = vshrl.u32 %v2125, 7
        %v2127 = vsub.s32 1, %v2126
        %v2128 = vrot.slane %v2119, %v2127
        %v2129 = vlaneseq
        %v2130 = vshrl.u32 %v2129, 7
        %v2131 = vsub.s32 2, %v2130
        %v2132 = vrot.slane %v2119, %v2131
        %v2133 = vlaneseq
        %v2134 = vshrl.u32 %v2133, 7
        %v2135 = vsub.s32 3, %v2134
        %v2136 = vrot.slane %v2119, %v2135
        %v2137 = vlaneseq
        %v2138 = vshrl.u32 %v2137, 7
        %v2139 = vsub.s32 4, %v2138
        %v2140 = vrot.slane %v2119, %v2139
        %v2141 = vlaneseq
        %v2142 = vshrl.u32 %v2141, 7
        %v2143 = vsub.s32 5, %v2142
        %v2144 = vrot.slane %v2119, %v2143
        %v2145 = vlaneseq
        %v2146 = vshrl.u32 %v2145, 7
        %v2147 = vsub.s32 6, %v2146
        %v2148 = vrot.slane %v2119, %v2147
        %v2149 = vlaneseq
        %v2150 = vshrl.u32 %v2149, 7
        %v2151 = vsub.s32 7, %v2150
        %v2152 = vrot.slane %v2119, %v2151
        %v2161 = vmul.f32 %v816, %v2124
        %v2162 = vmul.f32 %v817, %v2128
        %v2163 = vmul.f32 %v818, %v2132
        %v2164 = vmul.f32 %v819, %v2136
        %v2165 = vmul.f32 %v820, %v2140
        %v2166 = vmul.f32 %v821, %v2144
        %v2167 = vmul.f32 %v822, %v2148
        %v2168 = vmul.f32 %v823, %v2152
        %v2169 = vmul.f32 %v824, %v2124
        %v2170 = vmul.f32 %v825, %v2128
        %v2171 = vmul.f32 %v826, %v2132
        %v2172 = vmul.f32 %v827, %v2136
        %v2173 = vmul.f32 %v828, %v2140
        %v2174 = vmul.f32 %v829, %v2144
        %v2175 = vmul.f32 %v830, %v2148
        %v2176 = vmul.f32 %v831, %v2152
        %v2177 = vadd.f32 %v2100, %v2161
        %v2178 = vadd.f32 %v2101, %v2162
        %v2179 = vadd.f32 %v2102, %v2163
        %v2180 = vadd.f32 %v2103, %v2164
        %v2181 = vadd.f32 %v2104, %v2165
        %v2182 = vadd.f32 %v2105, %v2166
        %v2183 = vadd.f32 %v2106, %v2167
        %v2184 = vadd.f32 %v2107, %v2168
        %v2185 = vadd.f32 %v2108, %v2169
        %v2186 = vadd.f32 %v2109, %v2170
        %v2187 = vadd.f32 %v2110, %v2171
        %v2188 = vadd.f32 %v2111, %v2172
        %v2189 = vadd.f32 %v2112, %v2173
        %v2190 = vadd.f32 %v2113, %v2174
        %v2191 = vadd.f32 %v2114, %v2175
        %v2192 = vadd.f32 %v2115, %v2176
        %s2193 = scalar_lea.vmem [#allocation6], 130
        %v2194 = vld [vmem:[%s2193] ss:$8 sm:$0xf]
        %v2195 = vld [vmem:[%s2193] ss:$8 sm:$0xf0]
        %v2196 = vor.u32 %v2194, %v2195
        %v2198 = vlaneseq
        %v2199 = vshrl.u32 %v2198, 7
        %v2200 = vsub.s32 0, %v2199
        %v2201 = vrot.slane %v2196, %v2200
        %v2202 = vlaneseq
        %v2203 = vshrl.u32 %v2202, 7
        %v2204 = vsub.s32 1, %v2203
        %v2205 = vrot.slane %v2196, %v2204
        %v2206 = vlaneseq
        %v2207 = vshrl.u32 %v2206, 7
        %v2208 = vsub.s32 2, %v2207
        %v2209 = vrot.slane %v2196, %v2208
        %v2210 = vlaneseq
        %v2211 = vshrl.u32 %v2210, 7
        %v2212 = vsub.s32 3, %v2211
        %v2213 = vrot.slane %v2196, %v2212
        %v2214 = vlaneseq
        %v2215 = vshrl.u32 %v2214, 7
        %v2216 = vsub.s32 4, %v2215
        %v2217 = vrot.slane %v2196, %v2216
        %v2218 = vlaneseq
        %v2219 = vshrl.u32 %v2218, 7
        %v2220 = vsub.s32 5, %v2219
        %v2221 = vrot.slane %v2196, %v2220
        %v2222 = vlaneseq
        %v2223 = vshrl.u32 %v2222, 7
        %v2224 = vsub.s32 6, %v2223
        %v2225 = vrot.slane %v2196, %v2224
        %v2226 = vlaneseq
        %v2227 = vshrl.u32 %v2226, 7
        %v2228 = vsub.s32 7, %v2227
        %v2229 = vrot.slane %v2196, %v2228
        %v2238 = vmul.f32 %v909, %v2201
        %v2239 = vmul.f32 %v910, %v2205
        %v2240 = vmul.f32 %v911, %v2209
        %v2241 = vmul.f32 %v912, %v2213
        %v2242 = vmul.f32 %v913, %v2217
        %v2243 = vmul.f32 %v914, %v2221
        %v2244 = vmul.f32 %v915, %v2225
        %v2245 = vmul.f32 %v916, %v2229
        %v2246 = vmul.f32 %v917, %v2201
        %v2247 = vmul.f32 %v918, %v2205
        %v2248 = vmul.f32 %v919, %v2209
        %v2249 = vmul.f32 %v920, %v2213
        %v2250 = vmul.f32 %v921, %v2217
        %v2251 = vmul.f32 %v922, %v2221
        %v2252 = vmul.f32 %v923, %v2225
        %v2253 = vmul.f32 %v924, %v2229
        %v2254 = vadd.f32 %v2177, %v2238
        %v2255 = vadd.f32 %v2178, %v2239
        %v2256 = vadd.f32 %v2179, %v2240
        %v2257 = vadd.f32 %v2180, %v2241
        %v2258 = vadd.f32 %v2181, %v2242
        %v2259 = vadd.f32 %v2182, %v2243
        %v2260 = vadd.f32 %v2183, %v2244
        %v2261 = vadd.f32 %v2184, %v2245
        %v2262 = vadd.f32 %v2185, %v2246
        %v2263 = vadd.f32 %v2186, %v2247
        %v2264 = vadd.f32 %v2187, %v2248
        %v2265 = vadd.f32 %v2188, %v2249
        %v2266 = vadd.f32 %v2189, %v2250
        %v2267 = vadd.f32 %v2190, %v2251
        %v2268 = vadd.f32 %v2191, %v2252
        %v2269 = vadd.f32 %v2192, %v2253
        %s2270 = scalar_lea.vmem [#allocation6], 135
        %v2271 = vld [vmem:[%s2270] ss:$8 sm:$0xf]
        %v2272 = vld [vmem:[%s2270] ss:$8 sm:$0xf0]
        %v2273 = vor.u32 %v2271, %v2272
        %v2275 = vlaneseq
        %v2276 = vshrl.u32 %v2275, 7
        %v2277 = vsub.s32 0, %v2276
        %v2278 = vrot.slane %v2273, %v2277
        %v2279 = vlaneseq
        %v2280 = vshrl.u32 %v2279, 7
        %v2281 = vsub.s32 1, %v2280
        %v2282 = vrot.slane %v2273, %v2281
        %v2283 = vlaneseq
        %v2284 = vshrl.u32 %v2283, 7
        %v2285 = vsub.s32 2, %v2284
        %v2286 = vrot.slane %v2273, %v2285
        %v2287 = vlaneseq
        %v2288 = vshrl.u32 %v2287, 7
        %v2289 = vsub.s32 3, %v2288
        %v2290 = vrot.slane %v2273, %v2289
        %v2291 = vlaneseq
        %v2292 = vshrl.u32 %v2291, 7
        %v2293 = vsub.s32 4, %v2292
        %v2294 = vrot.slane %v2273, %v2293
        %v2295 = vlaneseq
        %v2296 = vshrl.u32 %v2295, 7
        %v2297 = vsub.s32 5, %v2296
        %v2298 = vrot.slane %v2273, %v2297
        %v2299 = vlaneseq
        %v2300 = vshrl.u32 %v2299, 7
        %v2301 = vsub.s32 6, %v2300
        %v2302 = vrot.slane %v2273, %v2301
        %v2303 = vlaneseq
        %v2304 = vshrl.u32 %v2303, 7
        %v2305 = vsub.s32 7, %v2304
        %v2306 = vrot.slane %v2273, %v2305
        %v2315 = vmul.f32 %v1002, %v2278
        %v2316 = vmul.f32 %v1003, %v2282
        %v2317 = vmul.f32 %v1004, %v2286
        %v2318 = vmul.f32 %v1005, %v2290
        %v2319 = vmul.f32 %v1006, %v2294
        %v2320 = vmul.f32 %v1007, %v2298
        %v2321 = vmul.f32 %v1008, %v2302
        %v2322 = vmul.f32 %v1009, %v2306
        %v2323 = vmul.f32 %v1010, %v2278
        %v2324 = vmul.f32 %v1011, %v2282
        %v2325 = vmul.f32 %v1012, %v2286
        %v2326 = vmul.f32 %v1013, %v2290
        %v2327 = vmul.f32 %v1014, %v2294
        %v2328 = vmul.f32 %v1015, %v2298
        %v2329 = vmul.f32 %v1016, %v2302
        %v2330 = vmul.f32 %v1017, %v2306
        %v2331 = vadd.f32 %v2254, %v2315
        %v2332 = vadd.f32 %v2255, %v2316
        %v2333 = vadd.f32 %v2256, %v2317
        %v2334 = vadd.f32 %v2257, %v2318
        %v2335 = vadd.f32 %v2258, %v2319
        %v2336 = vadd.f32 %v2259, %v2320
        %v2337 = vadd.f32 %v2260, %v2321
        %v2338 = vadd.f32 %v2261, %v2322
        %v2339 = vadd.f32 %v2262, %v2323
        %v2340 = vadd.f32 %v2263, %v2324
        %v2341 = vadd.f32 %v2264, %v2325
        %v2342 = vadd.f32 %v2265, %v2326
        %v2343 = vadd.f32 %v2266, %v2327
        %v2344 = vadd.f32 %v2267, %v2328
        %v2345 = vadd.f32 %v2268, %v2329
        %v2346 = vadd.f32 %v2269, %v2330
        %2347 = vrot.lane.b32.xlu0 %v2331, 64
        %v2348 = vpop.permute.xlu0 %2347
        %2349 = vrot.lane.b32.xlu0 %v2339, 64
        %v2350 = vpop.permute.xlu0 %2349
        %2351 = vrot.lane.b32.xlu0 %v2332, 64
        %v2352 = vpop.permute.xlu0 %2351
        %2353 = vrot.lane.b32.xlu0 %v2340, 64
        %v2354 = vpop.permute.xlu0 %2353
        %2355 = vrot.lane.b32.xlu0 %v2333, 64
        %v2356 = vpop.permute.xlu0 %2355
        %2357 = vrot.lane.b32.xlu0 %v2341, 64
        %v2358 = vpop.permute.xlu0 %2357
        %2359 = vrot.lane.b32.xlu0 %v2334, 64
        %v2360 = vpop.permute.xlu0 %2359
        %2361 = vrot.lane.b32.xlu0 %v2342, 64
        %v2362 = vpop.permute.xlu0 %2361
        %2363 = vrot.lane.b32.xlu0 %v2335, 64
        %v2364 = vpop.permute.xlu0 %2363
        %2365 = vrot.lane.b32.xlu0 %v2343, 64
        %v2366 = vpop.permute.xlu0 %2365
        %2367 = vrot.lane.b32.xlu0 %v2336, 64
        %v2368 = vpop.permute.xlu0 %2367
        %2369 = vrot.lane.b32.xlu0 %v2344, 64
        %v2370 = vpop.permute.xlu0 %2369
        %2371 = vrot.lane.b32.xlu0 %v2337, 64
        %v2372 = vpop.permute.xlu0 %2371
        %2373 = vrot.lane.b32.xlu0 %v2345, 64
        %v2374 = vpop.permute.xlu0 %2373
        %2375 = vrot.lane.b32.xlu0 %v2338, 64
        %v2376 = vpop.permute.xlu0 %2375
        %2377 = vrot.lane.b32.xlu0 %v2346, 64
        %v2378 = vpop.permute.xlu0 %2377
        %v2379 = vsel %vm1536, %v2372, %v2376
        %v2380 = vsel %vm1536, %v2374, %v2378
        %v2381 = vsel %vm1536, %v2368, %v2372
        %v2382 = vsel %vm1536, %v2370, %v2374
        %v2383 = vsel %vm1536, %v2364, %v2368
        %v2384 = vsel %vm1536, %v2366, %v2370
        %v2385 = vsel %vm1536, %v2360, %v2364
        %v2386 = vsel %vm1536, %v2362, %v2366
        %v2387 = vsel %vm1536, %v2356, %v2360
        %v2388 = vsel %vm1536, %v2358, %v2362
        %v2389 = vsel %vm1536, %v2352, %v2356
        %v2390 = vsel %vm1536, %v2354, %v2358
        %v2391 = vsel %vm1536, %v2348, %v2352
        %v2392 = vsel %vm1536, %v2350, %v2354
        %v2393 = vsel %vm1536, %v2376, %v2348
        %v2394 = vsel %vm1536, %v2378, %v2350
        %vm2395 = vcmp.lt.s32.totalorder %v217, 960
        %vm2396 = vcmp.lt.s32.totalorder %v218, 960
        %vm2397 = vcmp.lt.s32.totalorder %v219, 960
        %vm2398 = vcmp.lt.s32.totalorder %v220, 960
        %vm2399 = vcmp.lt.s32.totalorder %v221, 960
        %vm2400 = vcmp.lt.s32.totalorder %v222, 960
        %vm2401 = vcmp.lt.s32.totalorder %v223, 960
        %vm2402 = vcmp.lt.s32.totalorder %v224, 960
        %v2403 = vsel %vm2395, %v2391, 0.0
        %v2404 = vsel %vm2396, %v2389, 0.0
        %v2405 = vsel %vm2397, %v2387, 0.0
        %v2406 = vsel %vm2398, %v2385, 0.0
        %v2407 = vsel %vm2399, %v2383, 0.0
        %v2408 = vsel %vm2400, %v2381, 0.0
        %v2409 = vsel %vm2401, %v2379, 0.0
        %v2410 = vsel %vm2402, %v2393, 0.0
        %v2411 = vsel %vm2395, %v2392, 0.0
        %v2412 = vsel %vm2396, %v2390, 0.0
        %v2413 = vsel %vm2397, %v2388, 0.0
        %v2414 = vsel %vm2398, %v2386, 0.0
        %v2415 = vsel %vm2399, %v2384, 0.0
        %v2416 = vsel %vm2400, %v2382, 0.0
        %v2417 = vsel %vm2401, %v2380, 0.0
        %v2418 = vsel %vm2402, %v2394, 0.0
        %v2419 = vadd.f32 %v1962, %v2403
        %v2420 = vadd.f32 %v1963, %v2404
        %v2421 = vadd.f32 %v1964, %v2405
        %v2422 = vadd.f32 %v1965, %v2406
        %v2423 = vadd.f32 %v1966, %v2407
        %v2424 = vadd.f32 %v1967, %v2408
        %v2425 = vadd.f32 %v1968, %v2409
        %v2426 = vadd.f32 %v1969, %v2410
        %v2427 = vadd.f32 %v1970, %v2411
        %v2428 = vadd.f32 %v1971, %v2412
        %v2429 = vadd.f32 %v1972, %v2413
        %v2430 = vadd.f32 %v1973, %v2414
        %v2431 = vadd.f32 %v1974, %v2415
        %v2432 = vadd.f32 %v1975, %v2416
        %v2433 = vadd.f32 %v1976, %v2417
        %v2434 = vadd.f32 %v1977, %v2418
        %s2435 = scalar_lea.vmem [#allocation6], 70
        %v2436 = vld [vmem:[%s2435] ss:$8 sm:$0xf]
        %v2437 = vld [vmem:[%s2435] ss:$8 sm:$0xf0]
        %v2438 = vor.u32 %v2436, %v2437
        %v2440 = vlaneseq
        %v2441 = vshrl.u32 %v2440, 7
        %v2442 = vsub.s32 0, %v2441
        %v2443 = vrot.slane %v2438, %v2442
        %v2444 = vlaneseq
        %v2445 = vshrl.u32 %v2444, 7
        %v2446 = vsub.s32 1, %v2445
        %v2447 = vrot.slane %v2438, %v2446
        %v2448 = vlaneseq
        %v2449 = vshrl.u32 %v2448, 7
        %v2450 = vsub.s32 2, %v2449
        %v2451 = vrot.slane %v2438, %v2450
        %v2452 = vlaneseq
        %v2453 = vshrl.u32 %v2452, 7
        %v2454 = vsub.s32 3, %v2453
        %v2455 = vrot.slane %v2438, %v2454
        %v2456 = vlaneseq
        %v2457 = vshrl.u32 %v2456, 7
        %v2458 = vsub.s32 4, %v2457
        %v2459 = vrot.slane %v2438, %v2458
        %v2460 = vlaneseq
        %v2461 = vshrl.u32 %v2460, 7
        %v2462 = vsub.s32 5, %v2461
        %v2463 = vrot.slane %v2438, %v2462
        %v2464 = vlaneseq
        %v2465 = vshrl.u32 %v2464, 7
        %v2466 = vsub.s32 6, %v2465
        %v2467 = vrot.slane %v2438, %v2466
        %v2468 = vlaneseq
        %v2469 = vshrl.u32 %v2468, 7
        %v2470 = vsub.s32 7, %v2469
        %v2471 = vrot.slane %v2438, %v2470
        %v2480 = vmul.f32 %v225, %v2443
        %v2481 = vmul.f32 %v226, %v2447
        %v2482 = vmul.f32 %v227, %v2451
        %v2483 = vmul.f32 %v228, %v2455
        %v2484 = vmul.f32 %v229, %v2459
        %v2485 = vmul.f32 %v230, %v2463
        %v2486 = vmul.f32 %v231, %v2467
        %v2487 = vmul.f32 %v232, %v2471
        %v2488 = vmul.f32 %v233, %v2443
        %v2489 = vmul.f32 %v234, %v2447
        %v2490 = vmul.f32 %v235, %v2451
        %v2491 = vmul.f32 %v236, %v2455
        %v2492 = vmul.f32 %v237, %v2459
        %v2493 = vmul.f32 %v238, %v2463
        %v2494 = vmul.f32 %v239, %v2467
        %v2495 = vmul.f32 %v240, %v2471
        %s2496 = scalar_lea.vmem [#allocation6], 4
        %v2497 = vld [vmem:[%s2496] ss:$8 sm:$0xf]
        %v2498 = vld [vmem:[%s2496] ss:$8 sm:$0xf0]
        %v2499 = vor.u32 %v2497, %v2498
        %v2501 = vlaneseq
        %v2502 = vshrl.u32 %v2501, 7
        %v2503 = vsub.s32 0, %v2502
        %v2504 = vrot.slane %v2499, %v2503
        %v2505 = vlaneseq
        %v2506 = vshrl.u32 %v2505, 7
        %v2507 = vsub.s32 1, %v2506
        %v2508 = vrot.slane %v2499, %v2507
        %v2509 = vlaneseq
        %v2510 = vshrl.u32 %v2509, 7
        %v2511 = vsub.s32 2, %v2510
        %v2512 = vrot.slane %v2499, %v2511
        %v2513 = vlaneseq
        %v2514 = vshrl.u32 %v2513, 7
        %v2515 = vsub.s32 3, %v2514
        %v2516 = vrot.slane %v2499, %v2515
        %v2517 = vlaneseq
        %v2518 = vshrl.u32 %v2517, 7
        %v2519 = vsub.s32 4, %v2518
        %v2520 = vrot.slane %v2499, %v2519
        %v2521 = vlaneseq
        %v2522 = vshrl.u32 %v2521, 7
        %v2523 = vsub.s32 5, %v2522
        %v2524 = vrot.slane %v2499, %v2523
        %v2525 = vlaneseq
        %v2526 = vshrl.u32 %v2525, 7
        %v2527 = vsub.s32 6, %v2526
        %v2528 = vrot.slane %v2499, %v2527
        %v2529 = vlaneseq
        %v2530 = vshrl.u32 %v2529, 7
        %v2531 = vsub.s32 7, %v2530
        %v2532 = vrot.slane %v2499, %v2531
        %v2541 = vmul.f32 %v724, %v2504
        %v2542 = vmul.f32 %v725, %v2508
        %v2543 = vmul.f32 %v726, %v2512
        %v2544 = vmul.f32 %v727, %v2516
        %v2545 = vmul.f32 %v728, %v2520
        %v2546 = vmul.f32 %v729, %v2524
        %v2547 = vmul.f32 %v730, %v2528
        %v2548 = vmul.f32 %v731, %v2532
        %v2549 = vmul.f32 %v732, %v2504
        %v2550 = vmul.f32 %v733, %v2508
        %v2551 = vmul.f32 %v734, %v2512
        %v2552 = vmul.f32 %v735, %v2516
        %v2553 = vmul.f32 %v736, %v2520
        %v2554 = vmul.f32 %v737, %v2524
        %v2555 = vmul.f32 %v738, %v2528
        %v2556 = vmul.f32 %v739, %v2532
        %v2557 = vadd.f32 %v2480, %v2541
        %v2558 = vadd.f32 %v2481, %v2542
        %v2559 = vadd.f32 %v2482, %v2543
        %v2560 = vadd.f32 %v2483, %v2544
        %v2561 = vadd.f32 %v2484, %v2545
        %v2562 = vadd.f32 %v2485, %v2546
        %v2563 = vadd.f32 %v2486, %v2547
        %v2564 = vadd.f32 %v2487, %v2548
        %v2565 = vadd.f32 %v2488, %v2549
        %v2566 = vadd.f32 %v2489, %v2550
        %v2567 = vadd.f32 %v2490, %v2551
        %v2568 = vadd.f32 %v2491, %v2552
        %v2569 = vadd.f32 %v2492, %v2553
        %v2570 = vadd.f32 %v2493, %v2554
        %v2571 = vadd.f32 %v2494, %v2555
        %v2572 = vadd.f32 %v2495, %v2556
        %s2573 = scalar_lea.vmem [#allocation6], 65
        %v2574 = vld [vmem:[%s2573] ss:$8 sm:$0xf]
        %v2575 = vld [vmem:[%s2573] ss:$8 sm:$0xf0]
        %v2576 = vor.u32 %v2574, %v2575
        %v2578 = vlaneseq
        %v2579 = vshrl.u32 %v2578, 7
        %v2580 = vsub.s32 0, %v2579
        %v2581 = vrot.slane %v2576, %v2580
        %v2582 = vlaneseq
        %v2583 = vshrl.u32 %v2582, 7
        %v2584 = vsub.s32 1, %v2583
        %v2585 = vrot.slane %v2576, %v2584
        %v2586 = vlaneseq
        %v2587 = vshrl.u32 %v2586, 7
        %v2588 = vsub.s32 2, %v2587
        %v2589 = vrot.slane %v2576, %v2588
        %v2590 = vlaneseq
        %v2591 = vshrl.u32 %v2590, 7
        %v2592 = vsub.s32 3, %v2591
        %v2593 = vrot.slane %v2576, %v2592
        %v2594 = vlaneseq
        %v2595 = vshrl.u32 %v2594, 7
        %v2596 = vsub.s32 4, %v2595
        %v2597 = vrot.slane %v2576, %v2596
        %v2598 = vlaneseq
        %v2599 = vshrl.u32 %v2598, 7
        %v2600 = vsub.s32 5, %v2599
        %v2601 = vrot.slane %v2576, %v2600
        %v2602 = vlaneseq
        %v2603 = vshrl.u32 %v2602, 7
        %v2604 = vsub.s32 6, %v2603
        %v2605 = vrot.slane %v2576, %v2604
        %v2606 = vlaneseq
        %v2607 = vshrl.u32 %v2606, 7
        %v2608 = vsub.s32 7, %v2607
        %v2609 = vrot.slane %v2576, %v2608
        %v2618 = vmul.f32 %v816, %v2581
        %v2619 = vmul.f32 %v817, %v2585
        %v2620 = vmul.f32 %v818, %v2589
        %v2621 = vmul.f32 %v819, %v2593
        %v2622 = vmul.f32 %v820, %v2597
        %v2623 = vmul.f32 %v821, %v2601
        %v2624 = vmul.f32 %v822, %v2605
        %v2625 = vmul.f32 %v823, %v2609
        %v2626 = vmul.f32 %v824, %v2581
        %v2627 = vmul.f32 %v825, %v2585
        %v2628 = vmul.f32 %v826, %v2589
        %v2629 = vmul.f32 %v827, %v2593
        %v2630 = vmul.f32 %v828, %v2597
        %v2631 = vmul.f32 %v829, %v2601
        %v2632 = vmul.f32 %v830, %v2605
        %v2633 = vmul.f32 %v831, %v2609
        %v2634 = vadd.f32 %v2557, %v2618
        %v2635 = vadd.f32 %v2558, %v2619
        %v2636 = vadd.f32 %v2559, %v2620
        %v2637 = vadd.f32 %v2560, %v2621
        %v2638 = vadd.f32 %v2561, %v2622
        %v2639 = vadd.f32 %v2562, %v2623
        %v2640 = vadd.f32 %v2563, %v2624
        %v2641 = vadd.f32 %v2564, %v2625
        %v2642 = vadd.f32 %v2565, %v2626
        %v2643 = vadd.f32 %v2566, %v2627
        %v2644 = vadd.f32 %v2567, %v2628
        %v2645 = vadd.f32 %v2568, %v2629
        %v2646 = vadd.f32 %v2569, %v2630
        %v2647 = vadd.f32 %v2570, %v2631
        %v2648 = vadd.f32 %v2571, %v2632
        %v2649 = vadd.f32 %v2572, %v2633
        %s2650 = scalar_lea.vmem [#allocation6], 131
        %v2651 = vld [vmem:[%s2650] ss:$8 sm:$0xf]
        %v2652 = vld [vmem:[%s2650] ss:$8 sm:$0xf0]
        %v2653 = vor.u32 %v2651, %v2652
        %v2655 = vlaneseq
        %v2656 = vshrl.u32 %v2655, 7
        %v2657 = vsub.s32 0, %v2656
        %v2658 = vrot.slane %v2653, %v2657
        %v2659 = vlaneseq
        %v2660 = vshrl.u32 %v2659, 7
        %v2661 = vsub.s32 1, %v2660
        %v2662 = vrot.slane %v2653, %v2661
        %v2663 = vlaneseq
        %v2664 = vshrl.u32 %v2663, 7
        %v2665 = vsub.s32 2, %v2664
        %v2666 = vrot.slane %v2653, %v2665
        %v2667 = vlaneseq
        %v2668 = vshrl.u32 %v2667, 7
        %v2669 = vsub.s32 3, %v2668
        %v2670 = vrot.slane %v2653, %v2669
        %v2671 = vlaneseq
        %v2672 = vshrl.u32 %v2671, 7
        %v2673 = vsub.s32 4, %v2672
        %v2674 = vrot.slane %v2653, %v2673
        %v2675 = vlaneseq
        %v2676 = vshrl.u32 %v2675, 7
        %v2677 = vsub.s32 5, %v2676
        %v2678 = vrot.slane %v2653, %v2677
        %v2679 = vlaneseq
        %v2680 = vshrl.u32 %v2679, 7
        %v2681 = vsub.s32 6, %v2680
        %v2682 = vrot.slane %v2653, %v2681
        %v2683 = vlaneseq
        %v2684 = vshrl.u32 %v2683, 7
        %v2685 = vsub.s32 7, %v2684
        %v2686 = vrot.slane %v2653, %v2685
        %v2695 = vmul.f32 %v909, %v2658
        %v2696 = vmul.f32 %v910, %v2662
        %v2697 = vmul.f32 %v911, %v2666
        %v2698 = vmul.f32 %v912, %v2670
        %v2699 = vmul.f32 %v913, %v2674
        %v2700 = vmul.f32 %v914, %v2678
        %v2701 = vmul.f32 %v915, %v2682
        %v2702 = vmul.f32 %v916, %v2686
        %v2703 = vmul.f32 %v917, %v2658
        %v2704 = vmul.f32 %v918, %v2662
        %v2705 = vmul.f32 %v919, %v2666
        %v2706 = vmul.f32 %v920, %v2670
        %v2707 = vmul.f32 %v921, %v2674
        %v2708 = vmul.f32 %v922, %v2678
        %v2709 = vmul.f32 %v923, %v2682
        %v2710 = vmul.f32 %v924, %v2686
        %v2711 = vadd.f32 %v2634, %v2695
        %v2712 = vadd.f32 %v2635, %v2696
        %v2713 = vadd.f32 %v2636, %v2697
        %v2714 = vadd.f32 %v2637, %v2698
        %v2715 = vadd.f32 %v2638, %v2699
        %v2716 = vadd.f32 %v2639, %v2700
        %v2717 = vadd.f32 %v2640, %v2701
        %v2718 = vadd.f32 %v2641, %v2702
        %v2719 = vadd.f32 %v2642, %v2703
        %v2720 = vadd.f32 %v2643, %v2704
        %v2721 = vadd.f32 %v2644, %v2705
        %v2722 = vadd.f32 %v2645, %v2706
        %v2723 = vadd.f32 %v2646, %v2707
        %v2724 = vadd.f32 %v2647, %v2708
        %v2725 = vadd.f32 %v2648, %v2709
        %v2726 = vadd.f32 %v2649, %v2710
        %s2727 = scalar_lea.vmem [#allocation6], 192
        %v2728 = vld [vmem:[%s2727] ss:$8 sm:$0xf]
        %v2729 = vld [vmem:[%s2727] ss:$8 sm:$0xf0]
        %v2730 = vor.u32 %v2728, %v2729
        %v2732 = vlaneseq
        %v2733 = vshrl.u32 %v2732, 7
        %v2734 = vsub.s32 0, %v2733
        %v2735 = vrot.slane %v2730, %v2734
        %v2736 = vlaneseq
        %v2737 = vshrl.u32 %v2736, 7
        %v2738 = vsub.s32 1, %v2737
        %v2739 = vrot.slane %v2730, %v2738
        %v2740 = vlaneseq
        %v2741 = vshrl.u32 %v2740, 7
        %v2742 = vsub.s32 2, %v2741
        %v2743 = vrot.slane %v2730, %v2742
        %v2744 = vlaneseq
        %v2745 = vshrl.u32 %v2744, 7
        %v2746 = vsub.s32 3, %v2745
        %v2747 = vrot.slane %v2730, %v2746
        %v2748 = vlaneseq
        %v2749 = vshrl.u32 %v2748, 7
        %v2750 = vsub.s32 4, %v2749
        %v2751 = vrot.slane %v2730, %v2750
        %v2752 = vlaneseq
        %v2753 = vshrl.u32 %v2752, 7
        %v2754 = vsub.s32 5, %v2753
        %v2755 = vrot.slane %v2730, %v2754
        %v2756 = vlaneseq
        %v2757 = vshrl.u32 %v2756, 7
        %v2758 = vsub.s32 6, %v2757
        %v2759 = vrot.slane %v2730, %v2758
        %v2760 = vlaneseq
        %v2761 = vshrl.u32 %v2760, 7
        %v2762 = vsub.s32 7, %v2761
        %v2763 = vrot.slane %v2730, %v2762
        %v2772 = vmul.f32 %v1002, %v2735
        %v2773 = vmul.f32 %v1003, %v2739
        %v2774 = vmul.f32 %v1004, %v2743
        %v2775 = vmul.f32 %v1005, %v2747
        %v2776 = vmul.f32 %v1006, %v2751
        %v2777 = vmul.f32 %v1007, %v2755
        %v2778 = vmul.f32 %v1008, %v2759
        %v2779 = vmul.f32 %v1009, %v2763
        %v2780 = vmul.f32 %v1010, %v2735
        %v2781 = vmul.f32 %v1011, %v2739
        %v2782 = vmul.f32 %v1012, %v2743
        %v2783 = vmul.f32 %v1013, %v2747
        %v2784 = vmul.f32 %v1014, %v2751
        %v2785 = vmul.f32 %v1015, %v2755
        %v2786 = vmul.f32 %v1016, %v2759
        %v2787 = vmul.f32 %v1017, %v2763
        %v2788 = vadd.f32 %v2711, %v2772
        %v2789 = vadd.f32 %v2712, %v2773
        %v2790 = vadd.f32 %v2713, %v2774
        %v2791 = vadd.f32 %v2714, %v2775
        %v2792 = vadd.f32 %v2715, %v2776
        %v2793 = vadd.f32 %v2716, %v2777
        %v2794 = vadd.f32 %v2717, %v2778
        %v2795 = vadd.f32 %v2718, %v2779
        %v2796 = vadd.f32 %v2719, %v2780
        %v2797 = vadd.f32 %v2720, %v2781
        %v2798 = vadd.f32 %v2721, %v2782
        %v2799 = vadd.f32 %v2722, %v2783
        %v2800 = vadd.f32 %v2723, %v2784
        %v2801 = vadd.f32 %v2724, %v2785
        %v2802 = vadd.f32 %v2725, %v2786
        %v2803 = vadd.f32 %v2726, %v2787
        %vm2804 = vcmp.lt.s32.totalorder %v217, 896
        %vm2805 = vcmp.lt.s32.totalorder %v218, 896
        %vm2806 = vcmp.lt.s32.totalorder %v219, 896
        %vm2807 = vcmp.lt.s32.totalorder %v220, 896
        %vm2808 = vcmp.lt.s32.totalorder %v221, 896
        %vm2809 = vcmp.lt.s32.totalorder %v222, 896
        %vm2810 = vcmp.lt.s32.totalorder %v223, 896
        %vm2811 = vcmp.lt.s32.totalorder %v224, 896
        %v2812 = vsel %vm2804, %v2789, 0.0
        %v2813 = vsel %vm2805, %v2790, 0.0
        %v2814 = vsel %vm2806, %v2791, 0.0
        %v2815 = vsel %vm2807, %v2792, 0.0
        %v2816 = vsel %vm2808, %v2793, 0.0
        %v2817 = vsel %vm2809, %v2794, 0.0
        %v2818 = vsel %vm2810, %v2795, 0.0
        %v2819 = vsel %vm2811, %v2788, 0.0
        %v2820 = vsel %vm2804, %v2797, 0.0
        %v2821 = vsel %vm2805, %v2798, 0.0
        %v2822 = vsel %vm2806, %v2799, 0.0
        %v2823 = vsel %vm2807, %v2800, 0.0
        %v2824 = vsel %vm2808, %v2801, 0.0
        %v2825 = vsel %vm2809, %v2802, 0.0
        %v2826 = vsel %vm2810, %v2803, 0.0
        %v2827 = vsel %vm2811, %v2796, 0.0
        %v2828 = vadd.f32 %v2419, %v2812
        %v2829 = vadd.f32 %v2420, %v2813
        %v2830 = vadd.f32 %v2421, %v2814
        %v2831 = vadd.f32 %v2422, %v2815
        %v2832 = vadd.f32 %v2423, %v2816
        %v2833 = vadd.f32 %v2424, %v2817
        %v2834 = vadd.f32 %v2425, %v2818
        %v2835 = vadd.f32 %v2426, %v2819
        %v2836 = vadd.f32 %v2427, %v2820
        %v2837 = vadd.f32 %v2428, %v2821
        %v2838 = vadd.f32 %v2429, %v2822
        %v2839 = vadd.f32 %v2430, %v2823
        %v2840 = vadd.f32 %v2431, %v2824
        %v2841 = vadd.f32 %v2432, %v2825
        %v2842 = vadd.f32 %v2433, %v2826
        %v2843 = vadd.f32 %v2434, %v2827
        %v2844 = vxor.u32 %v2828, 2147483648
        %v2845 = vxor.u32 %v2829, 2147483648
        %v2846 = vxor.u32 %v2830, 2147483648
        %v2847 = vxor.u32 %v2831, 2147483648
        %v2848 = vxor.u32 %v2832, 2147483648
        %v2849 = vxor.u32 %v2833, 2147483648
        %v2850 = vxor.u32 %v2834, 2147483648
        %v2851 = vxor.u32 %v2835, 2147483648
        %v2852 = vxor.u32 %v2836, 2147483648
        %v2853 = vxor.u32 %v2837, 2147483648
        %v2854 = vxor.u32 %v2838, 2147483648
        %v2855 = vxor.u32 %v2839, 2147483648
        %v2856 = vxor.u32 %v2840, 2147483648
        %v2857 = vxor.u32 %v2841, 2147483648
        %v2858 = vxor.u32 %v2842, 2147483648
        %v2859 = vxor.u32 %v2843, 2147483648
        %v2860 = vmul.f32 %v2844, 1.442695
        %v2861 = vpow.pop %v2860
        %v2862 = vmul.f32 %v2845, 1.442695
        %v2863 = vpow.pop %v2862
        %v2864 = vmul.f32 %v2846, 1.442695
        %v2865 = vpow.pop %v2864
        %v2866 = vmul.f32 %v2847, 1.442695
        %v2867 = vpow.pop %v2866
        %v2868 = vmul.f32 %v2848, 1.442695
        %v2869 = vpow.pop %v2868
        %v2870 = vmul.f32 %v2849, 1.442695
        %v2871 = vpow.pop %v2870
        %v2872 = vmul.f32 %v2850, 1.442695
        %v2873 = vpow.pop %v2872
        %v2874 = vmul.f32 %v2851, 1.442695
        %v2875 = vpow.pop %v2874
        %v2876 = vmul.f32 %v2852, 1.442695
        %v2877 = vpow.pop %v2876
        %v2878 = vmul.f32 %v2853, 1.442695
        %v2879 = vpow.pop %v2878
        %v2880 = vmul.f32 %v2854, 1.442695
        %v2881 = vpow.pop %v2880
        %v2882 = vmul.f32 %v2855, 1.442695
        %v2883 = vpow.pop %v2882
        %v2884 = vmul.f32 %v2856, 1.442695
        %v2885 = vpow.pop %v2884
        %v2886 = vmul.f32 %v2857, 1.442695
        %v2887 = vpow.pop %v2886
        %v2888 = vmul.f32 %v2858, 1.442695
        %v2889 = vpow.pop %v2888
        %v2890 = vmul.f32 %v2859, 1.442695
        %v2891 = vpow.pop %v2890
        %v2892 = vadd.f32 %v2861, 1.0
        %v2893 = vadd.f32 %v2863, 1.0
        %v2894 = vadd.f32 %v2865, 1.0
        %v2895 = vadd.f32 %v2867, 1.0
        %v2896 = vadd.f32 %v2869, 1.0
        %v2897 = vadd.f32 %v2871, 1.0
        %v2898 = vadd.f32 %v2873, 1.0
        %v2899 = vadd.f32 %v2875, 1.0
        %v2900 = vadd.f32 %v2877, 1.0
        %v2901 = vadd.f32 %v2879, 1.0
        %v2902 = vadd.f32 %v2881, 1.0
        %v2903 = vadd.f32 %v2883, 1.0
        %v2904 = vadd.f32 %v2885, 1.0
        %v2905 = vadd.f32 %v2887, 1.0
        %v2906 = vadd.f32 %v2889, 1.0
        %v2907 = vadd.f32 %v2891, 1.0
        %v2908 = vrcp.pop %v2892
        %v2909 = vmul.f32 1.0, %v2908
        %v2910 = vrcp.pop %v2893
        %v2911 = vmul.f32 1.0, %v2910
        %v2912 = vrcp.pop %v2894
        %v2913 = vmul.f32 1.0, %v2912
        %v2914 = vrcp.pop %v2895
        %v2915 = vmul.f32 1.0, %v2914
        %v2916 = vrcp.pop %v2896
        %v2917 = vmul.f32 1.0, %v2916
        %v2918 = vrcp.pop %v2897
        %v2919 = vmul.f32 1.0, %v2918
        %v2920 = vrcp.pop %v2898
        %v2921 = vmul.f32 1.0, %v2920
        %v2922 = vrcp.pop %v2899
        %v2923 = vmul.f32 1.0, %v2922
        %v2924 = vrcp.pop %v2900
        %v2925 = vmul.f32 1.0, %v2924
        %v2926 = vrcp.pop %v2901
        %v2927 = vmul.f32 1.0, %v2926
        %v2928 = vrcp.pop %v2902
        %v2929 = vmul.f32 1.0, %v2928
        %v2930 = vrcp.pop %v2903
        %v2931 = vmul.f32 1.0, %v2930
        %v2932 = vrcp.pop %v2904
        %v2933 = vmul.f32 1.0, %v2932
        %v2934 = vrcp.pop %v2905
        %v2935 = vmul.f32 1.0, %v2934
        %v2936 = vrcp.pop %v2906
        %v2937 = vmul.f32 1.0, %v2936
        %v2938 = vrcp.pop %v2907
        %v2939 = vmul.f32 1.0, %v2938
        %v2940 = vmul.f32 %v225, %v2909
        %v2941 = vmul.f32 %v226, %v2911
        %v2942 = vmul.f32 %v227, %v2913
        %v2943 = vmul.f32 %v228, %v2915
        %v2944 = vmul.f32 %v229, %v2917
        %v2945 = vmul.f32 %v230, %v2919
        %v2946 = vmul.f32 %v231, %v2921
        %v2947 = vmul.f32 %v232, %v2923
        %v2948 = vmul.f32 %v233, %v2925
        %v2949 = vmul.f32 %v234, %v2927
        %v2950 = vmul.f32 %v235, %v2929
        %v2951 = vmul.f32 %v236, %v2931
        %v2952 = vmul.f32 %v237, %v2933
        %v2953 = vmul.f32 %v238, %v2935
        %v2954 = vmul.f32 %v239, %v2937
        %v2955 = vmul.f32 %v240, %v2939
        %2956 = vst [vmem:[%s215] sm:$0xff] %v2940
        %2957 = vst [vmem:[%s215 + $0x8] sm:$0xff] %v2941
        %2958 = vst [vmem:[%s215 + $0x10] sm:$0xff] %v2942
        %2959 = vst [vmem:[%s215 + $0x18] sm:$0xff] %v2943
        %2960 = vst [vmem:[%s215 + $0x20] sm:$0xff] %v2944
        %2961 = vst [vmem:[%s215 + $0x28] sm:$0xff] %v2945
        %2962 = vst [vmem:[%s215 + $0x30] sm:$0xff] %v2946
        %2963 = vst [vmem:[%s215 + $0x38] sm:$0xff] %v2947
        %2964 = vst [vmem:[%s215 + $0x40] sm:$0xff] %v2948
        %2965 = vst [vmem:[%s215 + $0x48] sm:$0xff] %v2949
        %2966 = vst [vmem:[%s215 + $0x50] sm:$0xff] %v2950
        %2967 = vst [vmem:[%s215 + $0x58] sm:$0xff] %v2951
        %2968 = vst [vmem:[%s215 + $0x60] sm:$0xff] %v2952
        %2969 = vst [vmem:[%s215 + $0x68] sm:$0xff] %v2953
        %2970 = vst [vmem:[%s215 + $0x70] sm:$0xff] %v2954
        %2971 = vst [vmem:[%s215 + $0x78] sm:$0xff] %v2955
        %s2972 = sand.u32 %s97, 1
        %s2973 = scalar_lea.sflag [#allocation5], %s2972
        %s2974 = sand.u32 %s97, 1
        %s2975 = smul.addr %s2974, 128
        %s2976 = scalar_lea.vmem [#allocation9], %s2975
        // Predicated region
        $region45: #{tpu_custom_call.1} parent=31 // pred_check
          %p2977 = pneg %p107
        $region46: #{tpu_custom_call.1} parent=31 // pred_check_branch
          %2979 = sbr.rel (%p2977) target = $region48
        $region47: #{tpu_custom_call.1} parent=31 // pred_region
          %s2981 = ssub.s32 2048, 2048
          %2982 = vsyncadd %s2973, %s2981
          %s2983 = smul.addr %s21, 16
          %s2984 = smul.addr %s2983, 128
          %s2985 = scalar_lea.hbm %s3, %s2984
          %s2986 = sshll.u32 %s2976, 4
          %s2987 = int_to_ptr.vmem [resolvable:$true] %s2986
          %2992 = dma.vmem_to_hbm [thread:$0]  %s2987, 2048, %s2985, %s2973, 1024, 1024, 64
        $region48: #{tpu_custom_call.1} parent=31 // pred_fallthru
          _
      $region32: #{tpu_custom_call.1} parent=5 // pred_fallthru
        _
      %p2993 = scmp.le.s32.totalorder 2, %s16
      // Predicated region
      $region49: #{tpu_custom_call.1} parent=5 // pred_check
        %p2994 = pneg %p2993
      $region50: #{tpu_custom_call.1} parent=5 // pred_check_branch
        %2996 = sbr.rel (%p2994) target = $region52
      $region51: #{tpu_custom_call.1} parent=5 // pred_region
        %s2997 = ssub.s32 %s16, 2
        // Predicated region
        $region53: #{tpu_custom_call.1} parent=51 // pred_check
          %p2998 = pneg %p113
        $region54: #{tpu_custom_call.1} parent=51 // pred_check_branch
          %3000 = sbr.rel (%p2998) target = $region56
        $region55: #{tpu_custom_call.1} parent=51 // pred_region
          %s3001 = sand.u32 %s98, 1
          %s3002 = scalar_lea.sflag [#allocation5], %s3001
          %s3003 = sand.u32 %s98, 1
          %s3004 = smul.addr %s3003, 128
          %s3005 = scalar_lea.vmem [#allocation9], %s3004
          %3006 = dma.done %s3002, 2048
        $region56: #{tpu_custom_call.1} parent=51 // pred_fallthru
          _
      $region52: #{tpu_custom_call.1} parent=5 // pred_fallthru
        _
    $region6: #{tpu_custom_call.1} parent=1 // loop_footer
      %s20 = sadd.s32 1, %s16
    $region7: #{tpu_custom_call.1} parent=1 // loop_footer_branch
      %15 = sbr.rel target = $region3
    $region8: #{tpu_custom_call.1} parent=1 // loop_exit
      _
    %3007 = vsyncpa [#allocation4], 1
    %s3008 = scalar_lea.sflag [#allocation4], 1
    %3009 = vsyncpa %s3008, 1
    %3010 = vsyncpa [#allocation7], 1
    %3011 = vsyncpa [#allocation5], 1
    %s3012 = scalar_lea.sflag [#allocation5], 1
    %3013 = vsyncpa %s3012, 1

</llo_original>
